<compile_context>
chip_gen: v6e
topology: v6e:2x2x1
jax: 0.10.0
libtpu: 0.0.40
codegen_flags: <defaults>
</compile_context>

<pallas_src>
import functools

import numpy as np
import jax
import jax.numpy as jnp
from jax.experimental import pallas as pl
from jax.experimental.pallas import tpu as pltpu

D_MODEL = 32
N_HEADS = 4
D_FF = 4 * D_MODEL            # d_ff = d_ff or 4 * d_model
EPS = 1e-5                    # nn.LayerNorm default eps
NEG_INF = -1e9                # additive mask value for cross-batch scores

# ---- packed small-parameter block (one row each, f32) -----------------------
(SA_BQKV, SA_BO, CA_BQ, CA_BKV, CA_BO, FFN_B1, FFN_B2,
 N1_G, N1_B, N2_G, N2_B, N3_G, N3_B) = range(13)
VEC_ROWS = 13
VEC_W = max(3 * D_MODEL, D_FF, 128)

# ---- packed weight block: one 128-lane-aligned slot per logical weight ------
_SLOT = max(128, 3 * D_MODEL, D_FF)
(W_SA_QKV, W_SA_O, W_CA_Q, W_CA_KV, W_CA_O, W_FF1, W_FF2T) = (
    i * _SLOT for i in range(7))
W_TOTAL = 7 * _SLOT


def _layernorm(y, gamma, beta):
    mu = jnp.mean(y, axis=-1, keepdims=True)
    var = jnp.mean((y - mu) ** 2, axis=-1, keepdims=True)
    return (y - mu) * jax.lax.rsqrt(var + EPS) * gamma + beta


def decoder_layer_kernel(x_ref, cross_ref, w_ref, vec_ref, mask_ref, o_ref,
                         *, batch, seq_q, seq_kv, n_heads, d_ff):
    D = x_ref.shape[-1]
    B, L, S, H, F = batch, seq_q, seq_kv, n_heads, d_ff
    dh = D // H
    M = B * L                       # query rows (batch folded into sublanes)
    N = B * S                       # cross key/value rows
    scale = 1.0 / float(dh) ** 0.5
    f32, bf16 = jnp.float32, jnp.bfloat16

    x = x_ref[...]                  # (M, D)  f32
    vec = vec_ref[...]              # (13, VEC_W) f32 packed biases / LN params
    w = w_ref[...]                  # (D, W_TOTAL) bf16 packed weights

    mask = mask_ref[...]            # (3*H*M, >=D) f32, host-precomputed
    head_mask = mask[0:H * M, 0:D]                   # {0,1}: block-diag per head
    add_self = mask[H * M:2 * H * M, 0:M]            # {0,-1e9}: cross-batch mask
    add_cross = mask[2 * H * M:3 * H * M, 0:N]       # {0,-1e9}

    def attention(q, k, v, add_mask):
        """q:(M,D), k/v:(R,D) f32 -> (M,D). All batches+heads in ONE MXU chain."""
        # Head h occupies query rows [h*M, (h+1)*M) with only its own feature
        # lanes non-zero, so one matmul yields every (batch, head) score block.
        q_exp = (jnp.tile(q, (H, 1)) * head_mask).astype(bf16)       # (H*M, D)
        s = jax.lax.dot_general(
            q_exp, k.astype(bf16),
            dimension_numbers=(((1,), (1,)), ((), ())),
            preferred_element_type=f32)                              # (H*M, R)
        s = s * scale + add_mask                      # kill cross-batch entries
        s = s - jnp.max(s, axis=-1, keepdims=True)
        p = jnp.exp(s)
        p = p / jnp.sum(p, axis=-1, keepdims=True)    # exact divide (parity)
        ctx = jnp.dot(p.astype(bf16), v.astype(bf16),
                      preferred_element_type=f32) * head_mask        # (H*M, D)
        out = ctx[0:M]
        for h in range(1, H):                         # fold H sublane groups
            out = out + ctx[h * M:(h + 1) * M]
        return out                                                   # (M, D)

    # ---- self attention + residual + norm1 ----------------------------------
    qkv = jnp.dot(x.astype(bf16), w[:, W_SA_QKV:W_SA_QKV + 3 * D],
                  preferred_element_type=f32)
    qkv = qkv + vec[SA_BQKV:SA_BQKV + 1, :3 * D]                     # (M, 3D)
    attn = attention(qkv[:, 0:D], qkv[:, D:2 * D], qkv[:, 2 * D:3 * D],
                     add_self)
    attn = jnp.dot(attn.astype(bf16), w[:, W_SA_O:W_SA_O + D],
                   preferred_element_type=f32) + vec[SA_BO:SA_BO + 1, :D]
    x = _layernorm(x + attn, vec[N1_G:N1_G + 1, :D], vec[N1_B:N1_B + 1, :D])

    # ---- cross attention + residual + norm2 ---------------------------------
    q = jnp.dot(x.astype(bf16), w[:, W_CA_Q:W_CA_Q + D],
                preferred_element_type=f32) + vec[CA_BQ:CA_BQ + 1, :D]
    kv = jnp.dot(cross_ref[...].astype(bf16), w[:, W_CA_KV:W_CA_KV + 2 * D],
                 preferred_element_type=f32) + vec[CA_BKV:CA_BKV + 1, :2 * D]
    attn = attention(q, kv[:, 0:D], kv[:, D:2 * D], add_cross)
    attn = jnp.dot(attn.astype(bf16), w[:, W_CA_O:W_CA_O + D],
                   preferred_element_type=f32) + vec[CA_BO:CA_BO + 1, :D]
    x = _layernorm(x + attn, vec[N2_G:N2_G + 1, :D], vec[N2_B:N2_B + 1, :D])

    # ---- pointwise-conv FFN + residual + norm3 ------------------------------
    h = jnp.dot(x.astype(bf16), w[:, W_FF1:W_FF1 + F],
                preferred_element_type=f32) + vec[FFN_B1:FFN_B1 + 1, :F]
    h = jnp.maximum(h, 0.0)                                          # ReLU
    y = jax.lax.dot_general(                                         # h @ w2
        h.astype(bf16), w[:, W_FF2T:W_FF2T + F],                     # w2 stored T
        dimension_numbers=(((1,), (1,)), ((), ())),
        preferred_element_type=f32) + vec[FFN_B2:FFN_B2 + 1, :D]
    o_ref[...] = _layernorm(x + y, vec[N3_G:N3_G + 1, :D],
                            vec[N3_B:N3_B + 1, :D])


def _make_masks(B, L, S, H, D):
    """Host-side (numpy) packed mask block: head mask + additive batch masks."""
    dh = D // H
    M, N = B * L, B * S
    W = max(D, M, N)
    blk = np.zeros((3 * H * M, W), np.float32)
    r = np.arange(H * M)
    head_of_row = r // M                       # head index of each expanded row
    bq = (r % M) // L                          # batch index of the query row
    head_of_col = np.arange(D) // dh
    blk[0:H * M, 0:D] = (head_of_row[:, None] == head_of_col[None, :])
    bk_self = np.arange(M) // L
    blk[H * M:2 * H * M, 0:M] = np.where(
        bq[:, None] == bk_self[None, :], 0.0, NEG_INF)
    bk_cross = np.arange(N) // S
    blk[2 * H * M:3 * H * M, 0:N] = np.where(
        bq[:, None] == bk_cross[None, :], 0.0, NEG_INF)
    return jnp.asarray(blk)


def decoder_layer(x, cross, p, n_heads=N_HEADS):
    B, L, D = x.shape
    S = cross.shape[1]
    x2d = x.reshape(B * L, D)                  # free wrapper-side batch fold
    cross2d = cross.reshape(B * S, D)
    masks = _make_masks(B, L, S, n_heads, D)   # compile-time constant

    kernel = functools.partial(decoder_layer_kernel, batch=B, seq_q=L,
                               seq_kv=S, n_heads=n_heads, d_ff=D_FF)
    vmem = pl.BlockSpec(memory_space=pltpu.MemorySpace.VMEM)
    out2d = pl.pallas_call(
        kernel,
        out_shape=jax.ShapeDtypeStruct((B * L, D), jnp.float32),
        in_specs=[vmem] * 5,
        out_specs=vmem,
    )(x2d, cross2d, p["w"], p["vec"], masks)
    return out2d.reshape(B, L, D)


def make_params(key):
    D, F = D_MODEL, D_FF
    ks = jax.random.split(key, 18)
    n = lambda k, shp, s=0.02: (s * jax.random.normal(k, shp)).astype(jnp.float32)

    sa_wq, sa_wk, sa_wv = n(ks[0], (D, D)), n(ks[1], (D, D)), n(ks[2], (D, D))
    sa_wo = n(ks[3], (D, D))
    ca_wq, ca_wk, ca_wv = n(ks[4], (D, D)), n(ks[5], (D, D)), n(ks[6], (D, D))
    ca_wo = n(ks[7], (D, D))
    w1 = n(ks[8], (D, F))                      # conv1 (k=1) as (in, out) matmul
    w2 = n(ks[9], (F, D))                      # conv2 (k=1)

    # Packed weight block, one 128-lane slot per weight, bf16 MXU operands.
    w = jnp.zeros((D, W_TOTAL), jnp.float32)
    w = w.at[:, W_SA_QKV:W_SA_QKV + 3 * D].set(
        jnp.concatenate([sa_wq, sa_wk, sa_wv], axis=1))
    w = w.at[:, W_SA_O:W_SA_O + D].set(sa_wo)
    w = w.at[:, W_CA_Q:W_CA_Q + D].set(ca_wq)
    w = w.at[:, W_CA_KV:W_CA_KV + 2 * D].set(
        jnp.concatenate([ca_wk, ca_wv], axis=1))
    w = w.at[:, W_CA_O:W_CA_O + D].set(ca_wo)
    w = w.at[:, W_FF1:W_FF1 + F].set(w1)
    w = w.at[:, W_FF2T:W_FF2T + F].set(w2.T)   # stored transposed (D, F)
    w = w.astype(jnp.bfloat16)

    # Packed small parameters (biases / LayerNorm gamma, beta), one row each.
    vec = jnp.zeros((VEC_ROWS, VEC_W), jnp.float32)
    vec = vec.at[SA_BQKV, :3 * D].set(n(ks[10], (3 * D,)))
    vec = vec.at[SA_BO, :D].set(n(ks[11], (D,)))
    cab = n(ks[12], (3 * D,))                  # cross in_proj_bias [q|k|v]
    vec = vec.at[CA_BQ, :D].set(cab[:D])
    vec = vec.at[CA_BKV, :2 * D].set(cab[D:])
    vec = vec.at[CA_BO, :D].set(n(ks[13], (D,)))
    vec = vec.at[FFN_B1, :F].set(n(ks[14], (F,)))
    vec = vec.at[FFN_B2, :D].set(n(ks[15], (D,)))
    vec = vec.at[N1_G, :D].set(1.0)
    vec = vec.at[N2_G, :D].set(1.0)
    vec = vec.at[N3_G, :D].set(1.0)
    # N1_B / N2_B / N3_B stay zero (LayerNorm default init).

    return {"w": w, "vec": vec}


def _reference(x, cross, p, n_heads=N_HEADS):
    """Pure-JAX f32 reference of the PyTorch DecoderLayer forward (eval mode)."""
    B, L, D = x.shape
    S = cross.shape[1]
    H, dh = n_heads, D // n_heads
    w = p["w"].astype(jnp.float32)
    vec = p["vec"]

    def ln(y, gi, bi):
        g, b = vec[gi, :D], vec[bi, :D]
        mu = y.mean(-1, keepdims=True)
        var = ((y - mu) ** 2).mean(-1, keepdims=True)
        return (y - mu) / jnp.sqrt(var + EPS) * g + b

    def mha(q_in, kv_in, wq, wk, wv, bq, bk, bv, wo, bo):
        q = q_in @ wq + bq
        k = kv_in @ wk + bk
        v = kv_in @ wv + bv
        split = lambda t: t.reshape(t.shape[0], t.shape[1], H, dh).transpose(0, 2, 1, 3)
        qh, kh, vh = split(q), split(k), split(v)
        s = jnp.einsum("bhqd,bhkd->bhqk", qh, kh) / (dh ** 0.5)
        pa = jax.nn.softmax(s, axis=-1)
        ctx = jnp.einsum("bhqk,bhkd->bhqd", pa, vh)
        ctx = ctx.transpose(0, 2, 1, 3).reshape(q_in.shape[0], -1, D)
        return ctx @ wo + bo

    sab = vec[SA_BQKV, :3 * D]
    a = mha(x, x,
            w[:, W_SA_QKV:W_SA_QKV + D], w[:, W_SA_QKV + D:W_SA_QKV + 2 * D],
            w[:, W_SA_QKV + 2 * D:W_SA_QKV + 3 * D],
            sab[:D], sab[D:2 * D], sab[2 * D:],
            w[:, W_SA_O:W_SA_O + D], vec[SA_BO, :D])
    x1 = ln(x + a, N1_G, N1_B)
    a = mha(x1, cross,
            w[:, W_CA_Q:W_CA_Q + D], w[:, W_CA_KV:W_CA_KV + D],
            w[:, W_CA_KV + D:W_CA_KV + 2 * D],
            vec[CA_BQ, :D], vec[CA_BKV, :D], vec[CA_BKV, D:2 * D],
            w[:, W_CA_O:W_CA_O + D], vec[CA_BO, :D])
    x2 = ln(x1 + a, N2_G, N2_B)
    h = jax.nn.relu(x2 @ w[:, W_FF1:W_FF1 + D_FF] + vec[FFN_B1, :D_FF])
    y = h @ w[:, W_FF2T:W_FF2T + D_FF].T + vec[FFN_B2, :D]
    return ln(x2 + y, N3_G, N3_B)


if __name__ == "__main__":
    key = jax.random.PRNGKey(0)
    k_p, k_x, k_c = jax.random.split(key, 3)

    B, L, S = 2, 8, 12   # batch, target seq len, cross (memory) seq len
    params = make_params(k_p)
    x = jax.random.normal(k_x, (B, L, D_MODEL), dtype=jnp.float32)
    cross = jax.random.normal(k_c, (B, S, D_MODEL), dtype=jnp.float32)

    out = jax.jit(decoder_layer)(x, cross, params)
    out = jax.block_until_ready(out)
    assert out.shape == (B, L, D_MODEL)
    assert bool(jnp.all(jnp.isfinite(out)))

    # Parity vs. pure-JAX f32 reference (bf16 MXU operands -> loose tolerance).
    ref = _reference(x, cross, params)
    max_err = float(jnp.max(jnp.abs(out - ref)))
    assert jnp.allclose(out, ref, atol=5e-2, rtol=5e-2), max_err
    print("KERNEL_OK")
</pallas_src>

<mosaic_0001>
module attributes {stable_mosaic.version = 11 : i64} {
  func.func @decoder_layer_kernel(%arg0: memref<16x32xf32, #tpu.memory_space<vmem>>, %arg1: memref<24x32xf32, #tpu.memory_space<vmem>>, %arg2: memref<32x896xbf16, #tpu.memory_space<vmem>>, %arg3: memref<13x128xf32, #tpu.memory_space<vmem>>, %arg4: memref<192x32xf32, #tpu.memory_space<vmem>>, %arg5: memref<16x32xf32, #tpu.memory_space<vmem>>) attributes {dimension_semantics = [], scalar_prefetch = 0 : i64, scratch_operands = 0 : i64, tpu.core_type = #tpu.core_type<tc>} {
    %c0 = arith.constant 0 : index
    %c0_0 = arith.constant 0 : index
    %0 = vector.load %arg0[%c0, %c0_0] : memref<16x32xf32, #tpu.memory_space<vmem>>, vector<16x32xf32>
    %c0_1 = arith.constant 0 : index
    %c0_2 = arith.constant 0 : index
    %1 = vector.load %arg3[%c0_1, %c0_2] : memref<13x128xf32, #tpu.memory_space<vmem>>, vector<13x128xf32>
    %c0_3 = arith.constant 0 : index
    %c0_4 = arith.constant 0 : index
    %2 = vector.load %arg2[%c0_3, %c0_4] : memref<32x896xbf16, #tpu.memory_space<vmem>>, vector<32x896xbf16>
    %c0_5 = arith.constant 0 : index
    %c0_6 = arith.constant 0 : index
    %3 = vector.load %arg4[%c0_5, %c0_6] : memref<192x32xf32, #tpu.memory_space<vmem>>, vector<192x32xf32>
    %4 = vector.extract_strided_slice %3 {offsets = [0, 0], sizes = [64, 32], strides = [1, 1]} : vector<192x32xf32> to vector<64x32xf32>
    %5 = vector.extract_strided_slice %3 {offsets = [64, 0], sizes = [64, 16], strides = [1, 1]} : vector<192x32xf32> to vector<64x16xf32>
    %6 = vector.extract_strided_slice %3 {offsets = [128, 0], sizes = [64, 24], strides = [1, 1]} : vector<192x32xf32> to vector<64x24xf32>
    %7 = arith.truncf %0 : vector<16x32xf32> to vector<16x32xbf16>
    %8 = vector.extract_strided_slice %2 {offsets = [0, 0], sizes = [32, 96], strides = [1, 1]} : vector<32x896xbf16> to vector<32x96xbf16>
    %cst = arith.constant dense<0.000000e+00> : vector<16x96xf32>
    %9 = tpu.matmul %7, %8, %cst {dimension_numbers = #tpu.dot_dimension_numbers<[1], [0], [0], [1], [0, 0, 1, 1], [], []>} : vector<16x32xbf16>, vector<32x96xbf16>, vector<16x96xf32> -> vector<16x96xf32>
    %10 = vector.extract_strided_slice %1 {offsets = [0, 0], sizes = [1, 96], strides = [1, 1]} : vector<13x128xf32> to vector<1x96xf32>
    %11 = vector.broadcast %10 : vector<1x96xf32> to vector<16x96xf32>
    %12 = arith.addf %9, %11 : vector<16x96xf32>
    %13 = vector.extract_strided_slice %12 {offsets = [0, 0], sizes = [16, 32], strides = [1, 1]} : vector<16x96xf32> to vector<16x32xf32>
    %14 = vector.extract_strided_slice %12 {offsets = [0, 32], sizes = [16, 32], strides = [1, 1]} : vector<16x96xf32> to vector<16x32xf32>
    %15 = vector.extract_strided_slice %12 {offsets = [0, 64], sizes = [16, 32], strides = [1, 1]} : vector<16x96xf32> to vector<16x32xf32>
    %16 = tpu.concatenate %13, %13, %13, %13 in 0 : vector<16x32xf32>, vector<16x32xf32>, vector<16x32xf32>, vector<16x32xf32> -> vector<64x32xf32>
    %17 = arith.mulf %16, %4 : vector<64x32xf32>
    %18 = arith.truncf %17 : vector<64x32xf32> to vector<64x32xbf16>
    %19 = arith.truncf %14 : vector<16x32xf32> to vector<16x32xbf16>
    %cst_7 = arith.constant dense<0.000000e+00> : vector<64x16xf32>
    %20 = tpu.matmul %18, %19, %cst_7 {dimension_numbers = #tpu.dot_dimension_numbers<[1], [1], [0], [0], [0, 0, 1, 0], [], []>} : vector<64x32xbf16>, vector<16x32xbf16>, vector<64x16xf32> -> vector<64x16xf32>
    %cst_8 = arith.constant 0.353553385 : f32
    %21 = vector.broadcast %cst_8 : f32 to vector<64x16xf32>
    %22 = arith.mulf %20, %21 : vector<64x16xf32>
    %23 = arith.addf %22, %5 : vector<64x16xf32>
    %cst_9 = arith.constant dense<0xFF800000> : vector<64xf32>
    %24 = vector.multi_reduction <maximumf>, %23, %cst_9 [1] : vector<64x16xf32> to vector<64xf32>
    %25 = vector.shape_cast %24 : vector<64xf32> to vector<64x1xf32>
    %26 = vector.broadcast %25 : vector<64x1xf32> to vector<64x16xf32>
    %27 = arith.subf %23, %26 : vector<64x16xf32>
    %28 = math.exp %27 : vector<64x16xf32>
    %cst_10 = arith.constant dense<0.000000e+00> : vector<64xf32>
    %29 = vector.multi_reduction <add>, %28, %cst_10 [1] : vector<64x16xf32> to vector<64xf32>
    %30 = vector.shape_cast %29 : vector<64xf32> to vector<64x1xf32>
    %31 = vector.broadcast %30 : vector<64x1xf32> to vector<64x16xf32>
    %32 = arith.divf %28, %31 : vector<64x16xf32>
    %33 = arith.truncf %32 : vector<64x16xf32> to vector<64x16xbf16>
    %34 = arith.truncf %15 : vector<16x32xf32> to vector<16x32xbf16>
    %cst_11 = arith.constant dense<0.000000e+00> : vector<64x32xf32>
    %35 = tpu.matmul %33, %34, %cst_11 {dimension_numbers = #tpu.dot_dimension_numbers<[1], [0], [0], [1], [0, 0, 1, 1], [], []>} : vector<64x16xbf16>, vector<16x32xbf16>, vector<64x32xf32> -> vector<64x32xf32>
    %36 = arith.mulf %35, %4 : vector<64x32xf32>
    %37 = vector.extract_strided_slice %36 {offsets = [0, 0], sizes = [16, 32], strides = [1, 1]} : vector<64x32xf32> to vector<16x32xf32>
    %38 = vector.extract_strided_slice %36 {offsets = [16, 0], sizes = [16, 32], strides = [1, 1]} : vector<64x32xf32> to vector<16x32xf32>
    %39 = arith.addf %37, %38 : vector<16x32xf32>
    %40 = vector.extract_strided_slice %36 {offsets = [32, 0], sizes = [16, 32], strides = [1, 1]} : vector<64x32xf32> to vector<16x32xf32>
    %41 = arith.addf %39, %40 : vector<16x32xf32>
    %42 = vector.extract_strided_slice %36 {offsets = [48, 0], sizes = [16, 32], strides = [1, 1]} : vector<64x32xf32> to vector<16x32xf32>
    %43 = arith.addf %41, %42 : vector<16x32xf32>
    %44 = arith.truncf %43 : vector<16x32xf32> to vector<16x32xbf16>
    %45 = vector.extract_strided_slice %2 {offsets = [0, 128], sizes = [32, 32], strides = [1, 1]} : vector<32x896xbf16> to vector<32x32xbf16>
    %cst_12 = arith.constant dense<0.000000e+00> : vector<16x32xf32>
    %46 = tpu.matmul %44, %45, %cst_12 {dimension_numbers = #tpu.dot_dimension_numbers<[1], [0], [0], [1], [0, 0, 1, 1], [], []>} : vector<16x32xbf16>, vector<32x32xbf16>, vector<16x32xf32> -> vector<16x32xf32>
    %47 = vector.extract_strided_slice %1 {offsets = [1, 0], sizes = [1, 32], strides = [1, 1]} : vector<13x128xf32> to vector<1x32xf32>
    %48 = vector.broadcast %47 : vector<1x32xf32> to vector<16x32xf32>
    %49 = arith.addf %46, %48 : vector<16x32xf32>
    %50 = arith.addf %0, %49 : vector<16x32xf32>
    %51 = vector.extract_strided_slice %1 {offsets = [7, 0], sizes = [1, 32], strides = [1, 1]} : vector<13x128xf32> to vector<1x32xf32>
    %52 = vector.extract_strided_slice %1 {offsets = [8, 0], sizes = [1, 32], strides = [1, 1]} : vector<13x128xf32> to vector<1x32xf32>
    %cst_13 = arith.constant dense<0.000000e+00> : vector<16xf32>
    %53 = vector.multi_reduction <add>, %50, %cst_13 [1] : vector<16x32xf32> to vector<16xf32>
    %54 = vector.shape_cast %53 : vector<16xf32> to vector<16x1xf32>
    %cst_14 = arith.constant 3.200000e+01 : f32
    %55 = vector.broadcast %cst_14 : f32 to vector<16x1xf32>
    %56 = arith.divf %54, %55 : vector<16x1xf32>
    %57 = vector.broadcast %56 : vector<16x1xf32> to vector<16x32xf32>
    %58 = arith.subf %50, %57 : vector<16x32xf32>
    %59 = arith.mulf %58, %58 : vector<16x32xf32>
    %cst_15 = arith.constant dense<0.000000e+00> : vector<16xf32>
    %60 = vector.multi_reduction <add>, %59, %cst_15 [1] : vector<16x32xf32> to vector<16xf32>
    %61 = vector.shape_cast %60 : vector<16xf32> to vector<16x1xf32>
    %cst_16 = arith.constant 3.200000e+01 : f32
    %62 = vector.broadcast %cst_16 : f32 to vector<16x1xf32>
    %63 = arith.divf %61, %62 : vector<16x1xf32>
    %64 = vector.broadcast %56 : vector<16x1xf32> to vector<16x32xf32>
    %65 = arith.subf %50, %64 : vector<16x32xf32>
    %cst_17 = arith.constant 9.99999974E-6 : f32
    %66 = vector.broadcast %cst_17 : f32 to vector<16x1xf32>
    %67 = arith.addf %63, %66 : vector<16x1xf32>
    %68 = math.rsqrt %67 : vector<16x1xf32>
    %69 = vector.broadcast %68 : vector<16x1xf32> to vector<16x32xf32>
    %70 = arith.mulf %65, %69 : vector<16x32xf32>
    %71 = vector.broadcast %51 : vector<1x32xf32> to vector<16x32xf32>
    %72 = arith.mulf %70, %71 : vector<16x32xf32>
    %73 = vector.broadcast %52 : vector<1x32xf32> to vector<16x32xf32>
    %74 = arith.addf %72, %73 : vector<16x32xf32>
    %75 = arith.truncf %74 : vector<16x32xf32> to vector<16x32xbf16>
    %76 = vector.extract_strided_slice %2 {offsets = [0, 256], sizes = [32, 32], strides = [1, 1]} : vector<32x896xbf16> to vector<32x32xbf16>
    %cst_18 = arith.constant dense<0.000000e+00> : vector<16x32xf32>
    %77 = tpu.matmul %75, %76, %cst_18 {dimension_numbers = #tpu.dot_dimension_numbers<[1], [0], [0], [1], [0, 0, 1, 1], [], []>} : vector<16x32xbf16>, vector<32x32xbf16>, vector<16x32xf32> -> vector<16x32xf32>
    %78 = vector.extract_strided_slice %1 {offsets = [2, 0], sizes = [1, 32], strides = [1, 1]} : vector<13x128xf32> to vector<1x32xf32>
    %79 = vector.broadcast %78 : vector<1x32xf32> to vector<16x32xf32>
    %80 = arith.addf %77, %79 : vector<16x32xf32>
    %c0_19 = arith.constant 0 : index
    %c0_20 = arith.constant 0 : index
    %81 = vector.load %arg1[%c0_19, %c0_20] : memref<24x32xf32, #tpu.memory_space<vmem>>, vector<24x32xf32>
    %82 = arith.truncf %81 : vector<24x32xf32> to vector<24x32xbf16>
    %83 = vector.extract_strided_slice %2 {offsets = [0, 384], sizes = [32, 64], strides = [1, 1]} : vector<32x896xbf16> to vector<32x64xbf16>
    %cst_21 = arith.constant dense<0.000000e+00> : vector<24x64xf32>
    %84 = tpu.matmul %82, %83, %cst_21 {dimension_numbers = #tpu.dot_dimension_numbers<[1], [0], [0], [1], [0, 0, 1, 1], [], []>} : vector<24x32xbf16>, vector<32x64xbf16>, vector<24x64xf32> -> vector<24x64xf32>
    %85 = vector.extract_strided_slice %1 {offsets = [3, 0], sizes = [1, 64], strides = [1, 1]} : vector<13x128xf32> to vector<1x64xf32>
    %86 = vector.broadcast %85 : vector<1x64xf32> to vector<24x64xf32>
    %87 = arith.addf %84, %86 : vector<24x64xf32>
    %88 = vector.extract_strided_slice %87 {offsets = [0, 0], sizes = [24, 32], strides = [1, 1]} : vector<24x64xf32> to vector<24x32xf32>
    %89 = vector.extract_strided_slice %87 {offsets = [0, 32], sizes = [24, 32], strides = [1, 1]} : vector<24x64xf32> to vector<24x32xf32>
    %90 = tpu.concatenate %80, %80, %80, %80 in 0 : vector<16x32xf32>, vector<16x32xf32>, vector<16x32xf32>, vector<16x32xf32> -> vector<64x32xf32>
    %91 = arith.mulf %90, %4 : vector<64x32xf32>
    %92 = arith.truncf %91 : vector<64x32xf32> to vector<64x32xbf16>
    %93 = arith.truncf %88 : vector<24x32xf32> to vector<24x32xbf16>
    %cst_22 = arith.constant dense<0.000000e+00> : vector<64x24xf32>
    %94 = tpu.matmul %92, %93, %cst_22 {dimension_numbers = #tpu.dot_dimension_numbers<[1], [1], [0], [0], [0, 0, 1, 0], [], []>} : vector<64x32xbf16>, vector<24x32xbf16>, vector<64x24xf32> -> vector<64x24xf32>
    %cst_23 = arith.constant 0.353553385 : f32
    %95 = vector.broadcast %cst_23 : f32 to vector<64x24xf32>
    %96 = arith.mulf %94, %95 : vector<64x24xf32>
    %97 = arith.addf %96, %6 : vector<64x24xf32>
    %cst_24 = arith.constant dense<0xFF800000> : vector<64xf32>
    %98 = vector.multi_reduction <maximumf>, %97, %cst_24 [1] : vector<64x24xf32> to vector<64xf32>
    %99 = vector.shape_cast %98 : vector<64xf32> to vector<64x1xf32>
    %100 = vector.broadcast %99 : vector<64x1xf32> to vector<64x24xf32>
    %101 = arith.subf %97, %100 : vector<64x24xf32>
    %102 = math.exp %101 : vector<64x24xf32>
    %cst_25 = arith.constant dense<0.000000e+00> : vector<64xf32>
    %103 = vector.multi_reduction <add>, %102, %cst_25 [1] : vector<64x24xf32> to vector<64xf32>
    %104 = vector.shape_cast %103 : vector<64xf32> to vector<64x1xf32>
    %105 = vector.broadcast %104 : vector<64x1xf32> to vector<64x24xf32>
    %106 = arith.divf %102, %105 : vector<64x24xf32>
    %107 = arith.truncf %106 : vector<64x24xf32> to vector<64x24xbf16>
    %108 = arith.truncf %89 : vector<24x32xf32> to vector<24x32xbf16>
    %cst_26 = arith.constant dense<0.000000e+00> : vector<64x32xf32>
    %109 = tpu.matmul %107, %108, %cst_26 {dimension_numbers = #tpu.dot_dimension_numbers<[1], [0], [0], [1], [0, 0, 1, 1], [], []>} : vector<64x24xbf16>, vector<24x32xbf16>, vector<64x32xf32> -> vector<64x32xf32>
    %110 = arith.mulf %109, %4 : vector<64x32xf32>
    %111 = vector.extract_strided_slice %110 {offsets = [0, 0], sizes = [16, 32], strides = [1, 1]} : vector<64x32xf32> to vector<16x32xf32>
    %112 = vector.extract_strided_slice %110 {offsets = [16, 0], sizes = [16, 32], strides = [1, 1]} : vector<64x32xf32> to vector<16x32xf32>
    %113 = arith.addf %111, %112 : vector<16x32xf32>
    %114 = vector.extract_strided_slice %110 {offsets = [32, 0], sizes = [16, 32], strides = [1, 1]} : vector<64x32xf32> to vector<16x32xf32>
    %115 = arith.addf %113, %114 : vector<16x32xf32>
    %116 = vector.extract_strided_slice %110 {offsets = [48, 0], sizes = [16, 32], strides = [1, 1]} : vector<64x32xf32> to vector<16x32xf32>
    %117 = arith.addf %115, %116 : vector<16x32xf32>
    %118 = arith.truncf %117 : vector<16x32xf32> to vector<16x32xbf16>
    %119 = vector.extract_strided_slice %2 {offsets = [0, 512], sizes = [32, 32], strides = [1, 1]} : vector<32x896xbf16> to vector<32x32xbf16>
    %cst_27 = arith.constant dense<0.000000e+00> : vector<16x32xf32>
    %120 = tpu.matmul %118, %119, %cst_27 {dimension_numbers = #tpu.dot_dimension_numbers<[1], [0], [0], [1], [0, 0, 1, 1], [], []>} : vector<16x32xbf16>, vector<32x32xbf16>, vector<16x32xf32> -> vector<16x32xf32>
    %121 = vector.extract_strided_slice %1 {offsets = [4, 0], sizes = [1, 32], strides = [1, 1]} : vector<13x128xf32> to vector<1x32xf32>
    %122 = vector.broadcast %121 : vector<1x32xf32> to vector<16x32xf32>
    %123 = arith.addf %120, %122 : vector<16x32xf32>
    %124 = arith.addf %74, %123 : vector<16x32xf32>
    %125 = vector.extract_strided_slice %1 {offsets = [9, 0], sizes = [1, 32], strides = [1, 1]} : vector<13x128xf32> to vector<1x32xf32>
    %126 = vector.extract_strided_slice %1 {offsets = [10, 0], sizes = [1, 32], strides = [1, 1]} : vector<13x128xf32> to vector<1x32xf32>
    %cst_28 = arith.constant dense<0.000000e+00> : vector<16xf32>
    %127 = vector.multi_reduction <add>, %124, %cst_28 [1] : vector<16x32xf32> to vector<16xf32>
    %128 = vector.shape_cast %127 : vector<16xf32> to vector<16x1xf32>
    %cst_29 = arith.constant 3.200000e+01 : f32
    %129 = vector.broadcast %cst_29 : f32 to vector<16x1xf32>
    %130 = arith.divf %128, %129 : vector<16x1xf32>
    %131 = vector.broadcast %130 : vector<16x1xf32> to vector<16x32xf32>
    %132 = arith.subf %124, %131 : vector<16x32xf32>
    %133 = arith.mulf %132, %132 : vector<16x32xf32>
    %cst_30 = arith.constant dense<0.000000e+00> : vector<16xf32>
    %134 = vector.multi_reduction <add>, %133, %cst_30 [1] : vector<16x32xf32> to vector<16xf32>
    %135 = vector.shape_cast %134 : vector<16xf32> to vector<16x1xf32>
    %cst_31 = arith.constant 3.200000e+01 : f32
    %136 = vector.broadcast %cst_31 : f32 to vector<16x1xf32>
    %137 = arith.divf %135, %136 : vector<16x1xf32>
    %138 = vector.broadcast %130 : vector<16x1xf32> to vector<16x32xf32>
    %139 = arith.subf %124, %138 : vector<16x32xf32>
    %cst_32 = arith.constant 9.99999974E-6 : f32
    %140 = vector.broadcast %cst_32 : f32 to vector<16x1xf32>
    %141 = arith.addf %137, %140 : vector<16x1xf32>
    %142 = math.rsqrt %141 : vector<16x1xf32>
    %143 = vector.broadcast %142 : vector<16x1xf32> to vector<16x32xf32>
    %144 = arith.mulf %139, %143 : vector<16x32xf32>
    %145 = vector.broadcast %125 : vector<1x32xf32> to vector<16x32xf32>
    %146 = arith.mulf %144, %145 : vector<16x32xf32>
    %147 = vector.broadcast %126 : vector<1x32xf32> to vector<16x32xf32>
    %148 = arith.addf %146, %147 : vector<16x32xf32>
    %149 = arith.truncf %148 : vector<16x32xf32> to vector<16x32xbf16>
    %150 = vector.extract_strided_slice %2 {offsets = [0, 640], sizes = [32, 128], strides = [1, 1]} : vector<32x896xbf16> to vector<32x128xbf16>
    %cst_33 = arith.constant dense<0.000000e+00> : vector<16x128xf32>
    %151 = tpu.matmul %149, %150, %cst_33 {dimension_numbers = #tpu.dot_dimension_numbers<[1], [0], [0], [1], [0, 0, 1, 1], [], []>} : vector<16x32xbf16>, vector<32x128xbf16>, vector<16x128xf32> -> vector<16x128xf32>
    %152 = vector.extract_strided_slice %1 {offsets = [5, 0], sizes = [1, 128], strides = [1, 1]} : vector<13x128xf32> to vector<1x128xf32>
    %153 = vector.broadcast %152 : vector<1x128xf32> to vector<16x128xf32>
    %154 = arith.addf %151, %153 : vector<16x128xf32>
    %cst_34 = arith.constant 0.000000e+00 : f32
    %155 = vector.broadcast %cst_34 : f32 to vector<16x128xf32>
    %156 = arith.maximumf %154, %155 : vector<16x128xf32>
    %157 = arith.truncf %156 : vector<16x128xf32> to vector<16x128xbf16>
    %158 = vector.extract_strided_slice %2 {offsets = [0, 768], sizes = [32, 128], strides = [1, 1]} : vector<32x896xbf16> to vector<32x128xbf16>
    %cst_35 = arith.constant dense<0.000000e+00> : vector<16x32xf32>
    %159 = tpu.matmul %157, %158, %cst_35 {dimension_numbers = #tpu.dot_dimension_numbers<[1], [1], [0], [0], [0, 0, 1, 0], [], []>} : vector<16x128xbf16>, vector<32x128xbf16>, vector<16x32xf32> -> vector<16x32xf32>
    %160 = vector.extract_strided_slice %1 {offsets = [6, 0], sizes = [1, 32], strides = [1, 1]} : vector<13x128xf32> to vector<1x32xf32>
    %161 = vector.broadcast %160 : vector<1x32xf32> to vector<16x32xf32>
    %162 = arith.addf %159, %161 : vector<16x32xf32>
    %163 = arith.addf %148, %162 : vector<16x32xf32>
    %164 = vector.extract_strided_slice %1 {offsets = [11, 0], sizes = [1, 32], strides = [1, 1]} : vector<13x128xf32> to vector<1x32xf32>
    %165 = vector.extract_strided_slice %1 {offsets = [12, 0], sizes = [1, 32], strides = [1, 1]} : vector<13x128xf32> to vector<1x32xf32>
    %cst_36 = arith.constant dense<0.000000e+00> : vector<16xf32>
    %166 = vector.multi_reduction <add>, %163, %cst_36 [1] : vector<16x32xf32> to vector<16xf32>
    %167 = vector.shape_cast %166 : vector<16xf32> to vector<16x1xf32>
    %cst_37 = arith.constant 3.200000e+01 : f32
    %168 = vector.broadcast %cst_37 : f32 to vector<16x1xf32>
    %169 = arith.divf %167, %168 : vector<16x1xf32>
    %170 = vector.broadcast %169 : vector<16x1xf32> to vector<16x32xf32>
    %171 = arith.subf %163, %170 : vector<16x32xf32>
    %172 = arith.mulf %171, %171 : vector<16x32xf32>
    %cst_38 = arith.constant dense<0.000000e+00> : vector<16xf32>
    %173 = vector.multi_reduction <add>, %172, %cst_38 [1] : vector<16x32xf32> to vector<16xf32>
    %174 = vector.shape_cast %173 : vector<16xf32> to vector<16x1xf32>
    %cst_39 = arith.constant 3.200000e+01 : f32
    %175 = vector.broadcast %cst_39 : f32 to vector<16x1xf32>
    %176 = arith.divf %174, %175 : vector<16x1xf32>
    %177 = vector.broadcast %169 : vector<16x1xf32> to vector<16x32xf32>
    %178 = arith.subf %163, %177 : vector<16x32xf32>
    %cst_40 = arith.constant 9.99999974E-6 : f32
    %179 = vector.broadcast %cst_40 : f32 to vector<16x1xf32>
    %180 = arith.addf %176, %179 : vector<16x1xf32>
    %181 = math.rsqrt %180 : vector<16x1xf32>
    %182 = vector.broadcast %181 : vector<16x1xf32> to vector<16x32xf32>
    %183 = arith.mulf %178, %182 : vector<16x32xf32>
    %184 = vector.broadcast %164 : vector<1x32xf32> to vector<16x32xf32>
    %185 = arith.mulf %183, %184 : vector<16x32xf32>
    %186 = vector.broadcast %165 : vector<1x32xf32> to vector<16x32xf32>
    %187 = arith.addf %185, %186 : vector<16x32xf32>
    %c0_41 = arith.constant 0 : index
    %c0_42 = arith.constant 0 : index
    %188 = vector.load %arg5[%c0_41, %c0_42] : memref<16x32xf32, #tpu.memory_space<vmem>>, vector<16x32xf32>
    tpu.vector_store %arg5[%c0_41, %c0_42], %187 {strides = array<i32>} : memref<16x32xf32, #tpu.memory_space<vmem>>, vector<16x32xf32>,
    return
  }
}

</mosaic_0001>

<llo_original>
// kernel: decoder_layer.1
$region0: #{decoder_layer.1}
  #allocation0 [shape = 'u32[]', space=smem, size = 0x4, offset = 0x4, fixed_abs, tag = 'smem constant byte address 0x4 - core index']
  #allocation1 [shape = 'u32[144,128]{1,0:T(1,128)}', space=vmem, size = 0x12000, scoped, tag = 'internal scratch']
  %s0 = inlined_call_operand.hbm [shape: f32[16,32], index: 0, kind: input, shape index: {}]
  %s1 = inlined_call_operand.vmem [shape: f32[24,32], index: 1, kind: input, shape index: {}]
  %s2 = inlined_call_operand.vmem [shape: bf16[32,896], index: 2, kind: input, shape index: {}]
  %s3 = inlined_call_operand.hbm [shape: f32[13,128], index: 3, kind: input, shape index: {}]
  %s4 = inlined_call_operand.hbm [shape: f32[192,32], index: 4, kind: input, shape index: {}]
  %s5 = inlined_call_operand.hbm [shape: f32[16,32], index: 5, kind: output, shape index: {}]
  %s6 = sld [smem:[#allocation0]]
  $region42: #{decoder_layer.1} parent=0
    _
  %s8 = ssub.s32 1, %s6
  %s9 = scalar_select 0, %s8, %s6
  $region1: #{decoder_layer.1} parent=0
    #allocation2 [shape = 'u8[8192]{0}', space=vmem, size = 0x2000, scoped, tag = 'input window, operand 0, single buffered']
    #allocation3 [shape = 's32[1]{0}', space=sflag, size = 0x4, scoped, tag = 'scoped memory for decoder_layer.1']
    #allocation4 [shape = 's32[1]{0}', space=sflag, size = 0x4, scoped, tag = 'scoped memory for decoder_layer.1']
    #allocation5 [shape = 'u8[8192]{0}', space=vmem, size = 0x2000, scoped, tag = 'input window, operand 3, single buffered']
    #allocation6 [shape = 's32[1]{0}', space=sflag, size = 0x4, scoped, tag = 'scoped memory for decoder_layer.1']
    #allocation7 [shape = 'u8[98304]{0}', space=vmem, size = 0x18000, scoped, tag = 'input window, operand 4, single buffered']
    #allocation8 [shape = 'u8[8192]{0}', space=vmem, size = 0x2000, scoped, tag = 'output window, operand 0, single buffered']
    %10 = vsyncpa [#allocation3], 0
    %11 = vsyncpa [#allocation6], 0
    %12 = vsyncpa [#allocation4], 0
    // Predicated region
    $region2: #{decoder_layer.1} parent=1 // pred_check
      _
    $region3: #{decoder_layer.1} parent=1 // pred_check_branch
      %14 = sbr.rel (0) target = $region5
    $region4: #{decoder_layer.1} parent=1 // pred_region
      %s16 = ssub.s32 256, 256
      %17 = vsyncadd [#allocation3], %s16
      %s18 = sshll.u32 [#allocation2], 4
      %s19 = int_to_ptr.vmem [resolvable:$true] %s18
      %24 = dma.hbm_to_vmem [thread:$0]  %s0, 256, %s19, [#allocation3], 128, 128, 8
    $region5: #{decoder_layer.1} parent=1 // pred_fallthru
      _
    // Predicated region
    $region6: #{decoder_layer.1} parent=1 // pred_check
      _
    $region7: #{decoder_layer.1} parent=1 // pred_check_branch
      %26 = sbr.rel (0) target = $region9
    $region8: #{decoder_layer.1} parent=1 // pred_region
      _
    $region9: #{decoder_layer.1} parent=1 // pred_fallthru
      _
    // Predicated region
    $region10: #{decoder_layer.1} parent=1 // pred_check
      _
    $region11: #{decoder_layer.1} parent=1 // pred_check_branch
      %28 = sbr.rel (0) target = $region13
    $region12: #{decoder_layer.1} parent=1 // pred_region
      _
    $region13: #{decoder_layer.1} parent=1 // pred_fallthru
      _
    // Predicated region
    $region14: #{decoder_layer.1} parent=1 // pred_check
      _
    $region15: #{decoder_layer.1} parent=1 // pred_check_branch
      %30 = sbr.rel (0) target = $region17
    $region16: #{decoder_layer.1} parent=1 // pred_region
      %s32 = ssub.s32 256, 256
      %33 = vsyncadd [#allocation6], %s32
      %s34 = sshll.u32 [#allocation5], 4
      %s35 = int_to_ptr.vmem [resolvable:$true] %s34
      %40 = dma.hbm_to_vmem [thread:$0]  %s3, 256, %s35, [#allocation6], 128, 128, 8
    $region17: #{decoder_layer.1} parent=1 // pred_fallthru
      _
    // Predicated region
    $region18: #{decoder_layer.1} parent=1 // pred_check
      _
    $region19: #{decoder_layer.1} parent=1 // pred_check_branch
      %42 = sbr.rel (0) target = $region21
    $region20: #{decoder_layer.1} parent=1 // pred_region
      %s44 = ssub.s32 3072, 3072
      %45 = vsyncadd [#allocation6], %s44
      %s46 = sshll.u32 [#allocation7], 4
      %s47 = int_to_ptr.vmem [resolvable:$true] %s46
      %52 = dma.hbm_to_vmem [thread:$0]  %s4, 3072, %s47, [#allocation6], 128, 128, 8
    $region21: #{decoder_layer.1} parent=1 // pred_fallthru
      _
    // Predicated region
    $region22: #{decoder_layer.1} parent=1 // pred_check
      _
    $region23: #{decoder_layer.1} parent=1 // pred_check_branch
      %54 = sbr.rel (0) target = $region25
    $region24: #{decoder_layer.1} parent=1 // pred_region
      %55 = dma.done [#allocation3], 256
    $region25: #{decoder_layer.1} parent=1 // pred_fallthru
      _
    // Predicated region
    $region26: #{decoder_layer.1} parent=1 // pred_check
      _
    $region27: #{decoder_layer.1} parent=1 // pred_check_branch
      %57 = sbr.rel (0) target = $region29
    $region28: #{decoder_layer.1} parent=1 // pred_region
      %58 = dma.done [#allocation6], 256
    $region29: #{decoder_layer.1} parent=1 // pred_fallthru
      _
    // Predicated region
    $region30: #{decoder_layer.1} parent=1 // pred_check
      _
    $region31: #{decoder_layer.1} parent=1 // pred_check_branch
      %60 = sbr.rel (0) target = $region33
    $region32: #{decoder_layer.1} parent=1 // pred_region
      %61 = dma.done [#allocation6], 3072
    $region33: #{decoder_layer.1} parent=1 // pred_fallthru
      _
    %v63 = vld [vmem:[#allocation2] sm:$0xff]
    %v64 = vld [vmem:[#allocation2 + $0x8] sm:$0xff]
    %v65 = vld [vmem:[#allocation5] sm:$0xff]
    %v66 = vld [vmem:[#allocation5 + $0x8] sm:$0x1f]
    %v67 = vld [vmem:[%s2] sm:$0xff]
    %v68 = vld [vmem:[%s2 + $0x8] sm:$0xff]
    %v69 = vld [vmem:[%s2 + $0x10] sm:$0xff]
    %v70 = vld [vmem:[%s2 + $0x18] sm:$0xf]
    %v71 = vld [vmem:[%s2 + $0x1c] sm:$0xff]
    %v72 = vld [vmem:[%s2 + $0x24] sm:$0xff]
    %v73 = vld [vmem:[%s2 + $0x2c] sm:$0xff]
    %v74 = vld [vmem:[%s2 + $0x34] sm:$0xf]
    %v75 = vld [vmem:[%s2 + $0x38] sm:$0xff]
    %v76 = vld [vmem:[%s2 + $0x40] sm:$0xff]
    %v77 = vld [vmem:[%s2 + $0x48] sm:$0xff]
    %v78 = vld [vmem:[%s2 + $0x50] sm:$0xf]
    %v79 = vld [vmem:[%s2 + $0x54] sm:$0xff]
    %v80 = vld [vmem:[%s2 + $0x5c] sm:$0xff]
    %v81 = vld [vmem:[%s2 + $0x64] sm:$0xff]
    %v82 = vld [vmem:[%s2 + $0x6c] sm:$0xf]
    %v83 = vld [vmem:[#allocation7] sm:$0xff]
    %v84 = vld [vmem:[#allocation7 + $0x8] sm:$0xff]
    %v85 = vld [vmem:[#allocation7 + $0x10] sm:$0xff]
    %v86 = vld [vmem:[#allocation7 + $0x18] sm:$0xff]
    %v87 = vld [vmem:[#allocation7 + $0x20] sm:$0xff]
    %v88 = vld [vmem:[#allocation7 + $0x28] sm:$0xff]
    %v89 = vld [vmem:[#allocation7 + $0x30] sm:$0xff]
    %v90 = vld [vmem:[#allocation7 + $0x38] sm:$0xff]
    %v91 = vld [vmem:[#allocation7 + $0x40] sm:$0xff]
    %v92 = vld [vmem:[#allocation7 + $0x48] sm:$0xff]
    %v93 = vld [vmem:[#allocation7 + $0x50] sm:$0xff]
    %v94 = vld [vmem:[#allocation7 + $0x58] sm:$0xff]
    %v95 = vld [vmem:[#allocation7 + $0x60] sm:$0xff]
    %v96 = vld [vmem:[#allocation7 + $0x68] sm:$0xff]
    %v97 = vld [vmem:[#allocation7 + $0x70] sm:$0xff]
    %v98 = vld [vmem:[#allocation7 + $0x78] sm:$0xff]
    %v99 = vld [vmem:[#allocation7 + $0x80] sm:$0xff]
    %v100 = vld [vmem:[#allocation7 + $0x88] sm:$0xff]
    %v101 = vld [vmem:[#allocation7 + $0x90] sm:$0xff]
    %v102 = vld [vmem:[#allocation7 + $0x98] sm:$0xff]
    %v103 = vld [vmem:[#allocation7 + $0xa0] sm:$0xff]
    %v104 = vld [vmem:[#allocation7 + $0xa8] sm:$0xff]
    %v105 = vld [vmem:[#allocation7 + $0xb0] sm:$0xff]
    %v106 = vld [vmem:[#allocation7 + $0xb8] sm:$0xff]
    %v107 = vpack.c.bf16 %v64, %v63
    %v108 = vlaneseq
    %v109 = vshrl.u32 %v108, 7
    %v110 = vsub.s32 0, %v109
    %v111 = vrot.slane %v65, %v110
    %v116 = vunpack.c.l.b16 %v67
    %v117 = vunpack.c.l.b16 %v71
    %v118 = vunpack.c.l.b16 %v75
    %v119 = vunpack.c.l.b16 %v79
    %v120 = vpack.c.b16 %v117, %v116
    %v121 = vpack.c.b16 %v119, %v118
    %vm124 = vcmask 261120
    %v126 = vsel %vm124, %v107, 0
    %128 = vmatprep.subr.bf16.mxu0 0
    %129 = vmatpush1.bf16.msra.mxu0 0
    %130 = vmatprep.subr.bf16.mxu0 0
    %131 = vmatpush1.bf16.msra.mxu0 0
    %132 = vmatprep.subr.bf16.mxu0 0
    %133 = vmatpush1.bf16.msra.mxu0 0
    %134 = vmatprep.subr.bf16.mxu0 0
    %135 = vmatpush1.bf16.msra.mxu0 0
    %136 = vmatprep.subr.bf16.mxu0 0
    %137 = vmatpush1.bf16.msra.mxu0 0
    %138 = vmatprep.subr.bf16.mxu0 0
    %139 = vmatpush1.bf16.msra.mxu0 0
    %140 = vmatprep.subr.bf16.mxu0 0
    %141 = vmatpush1.bf16.msra.mxu0 %v121
    %142 = vmatprep.subr.bf16.mxu0 0
    %143 = vmatpush1.bf16.msra.mxu0 %v120
    %144 = vmatprep.subr.bf16.mxu0 0
    %145 = vmatpush2.bf16.msra.mxu0 0
    %146 = vmatprep.subr.bf16.mxu0 0
    %147 = vmatpush2.bf16.msra.mxu0 0
    %148 = vmatprep.subr.bf16.mxu0 0
    %149 = vmatpush2.bf16.msra.mxu0 0
    %150 = vmatprep.subr.bf16.mxu0 0
    %151 = vmatpush2.bf16.msra.mxu0 0
    %152 = vmatprep.subr.bf16.mxu0 0
    %153 = vmatpush2.bf16.msra.mxu0 0
    %154 = vmatprep.subr.bf16.mxu0 0
    %155 = vmatpush2.bf16.msra.mxu0 0
    %156 = vmatprep.subr.bf16.mxu0 0
    %157 = vmatpush2.bf16.msra.mxu0 0
    %158 = vmatprep.subr.bf16.mxu0 0
    %159 = vmatpush2.bf16.msra.mxu0 0
    %160 = vmatprep.mubr.bf16.mxu0 0
    %161 = vmatmul.mubr.bf16.gmra.mxu0 %v126
    %v162 = vpop.f32.mrf.mxu0
    %v163 = vadd.f32 %v111, %v162
    %v164 = vpop.f32.mrf.mxu0
    %v165 = vpop.f32.mrf.mxu0
    %v166 = vadd.f32 %v111, %v165
    %v167 = vpop.f32.mrf.mxu0
    %168 = vdwg.mxu0
    %v169 = vmul.f32 %v163, %v83
    %v170 = vmul.f32 %v166, %v84
    %v171 = vmul.f32 %v163, %v85
    %v172 = vmul.f32 %v166, %v86
    %v173 = vmul.f32 %v163, %v87
    %v174 = vmul.f32 %v166, %v88
    %v175 = vmul.f32 %v163, %v89
    %v176 = vmul.f32 %v166, %v90
    %v177 = vpack.c.bf16 %v170, %v169
    %v178 = vpack.c.bf16 %v172, %v171
    %v179 = vpack.c.bf16 %v174, %v173
    %v180 = vpack.c.bf16 %v176, %v175
    %v181 = vpack.c.bf16 %v166, %v163
    %183 = vrot.lane.b32.xlu0 %v181, 96
    %v184 = vpop.permute.xlu0 %183
    %v186 = vsel %vm124, %v177, 0
    %v189 = vsel %vm124, %v178, 0
    %v192 = vsel %vm124, %v179, 0
    %v195 = vsel %vm124, %v180, 0
    %v198 = vsel %vm124, %v184, 0
    %200 = vmatprep.subr.bf16.mxu0 0
    %201 = vmatpush1.bf16.xpose.msra.mxu0 0
    %202 = vmatprep.subr.bf16.mxu0 0
    %203 = vmatpush1.bf16.xpose.msra.mxu0 0
    %204 = vmatprep.subr.bf16.mxu0 0
    %205 = vmatpush1.bf16.xpose.msra.mxu0 0
    %206 = vmatprep.subr.bf16.mxu0 0
    %207 = vmatpush1.bf16.xpose.msra.mxu0 0
    %208 = vmatprep.subr.bf16.mxu0 0
    %209 = vmatpush1.bf16.xpose.msra.mxu0 0
    %210 = vmatprep.subr.bf16.mxu0 0
    %211 = vmatpush1.bf16.xpose.msra.mxu0 0
    %212 = vmatprep.subr.bf16.mxu0 0
    %213 = vmatpush1.bf16.xpose.msra.mxu0 0
    %214 = vmatprep.subr.bf16.mxu0 0
    %215 = vmatpush1.bf16.xpose.msra.mxu0 %v198
    %216 = vmatprep.subr.bf16.mxu0 0
    %217 = vmatpush2.bf16.xpose.msra.mxu0 0
    %218 = vmatprep.subr.bf16.mxu0 0
    %219 = vmatpush2.bf16.xpose.msra.mxu0 0
    %220 = vmatprep.subr.bf16.mxu0 0
    %221 = vmatpush2.bf16.xpose.msra.mxu0 0
    %222 = vmatprep.subr.bf16.mxu0 0
    %223 = vmatpush2.bf16.xpose.msra.mxu0 0
    %224 = vmatprep.subr.bf16.mxu0 0
    %225 = vmatpush2.bf16.xpose.msra.mxu0 0
    %226 = vmatprep.subr.bf16.mxu0 0
    %227 = vmatpush2.bf16.xpose.msra.mxu0 0
    %228 = vmatprep.subr.bf16.mxu0 0
    %229 = vmatpush2.bf16.xpose.msra.mxu0 0
    %230 = vmatprep.subr.bf16.mxu0 0
    %231 = vmatpush2.bf16.xpose.msra.mxu0 0
    %232 = vmatprep.mubr.bf16.mxu0 0
    %233 = vmatmul.mubr.bf16.gmra.mxu0 %v186
    %v234 = vpop.f32.mrf.mxu0
    %v235 = vadd.f32 0.0, %v234
    %v236 = vpop.f32.mrf.mxu0
    %v237 = vpop.f32.mrf.mxu0
    %v238 = vadd.f32 0.0, %v237
    %v239 = vpop.f32.mrf.mxu0
    %240 = vmatprep.mubr.bf16.mxu0 0
    %241 = vmatmul.mubr.bf16.gmra.mxu0 %v189
    %v242 = vpop.f32.mrf.mxu0
    %v243 = vadd.f32 0.0, %v242
    %v244 = vpop.f32.mrf.mxu0
    %v245 = vpop.f32.mrf.mxu0
    %v246 = vadd.f32 0.0, %v245
    %v247 = vpop.f32.mrf.mxu0
    %248 = vmatprep.mubr.bf16.mxu0 0
    %249 = vmatmul.mubr.bf16.gmra.mxu0 %v192
    %v250 = vpop.f32.mrf.mxu0
    %v251 = vadd.f32 0.0, %v250
    %v252 = vpop.f32.mrf.mxu0
    %v253 = vpop.f32.mrf.mxu0
    %v254 = vadd.f32 0.0, %v253
    %v255 = vpop.f32.mrf.mxu0
    %256 = vmatprep.mubr.bf16.mxu0 0
    %257 = vmatmul.mubr.bf16.gmra.mxu0 %v195
    %v258 = vpop.f32.mrf.mxu0
    %v259 = vadd.f32 0.0, %v258
    %v260 = vpop.f32.mrf.mxu0
    %v261 = vpop.f32.mrf.mxu0
    %v262 = vadd.f32 0.0, %v261
    %v263 = vpop.f32.mrf.mxu0
    %264 = vdwg.mxu0
    %v265 = vmul.f32 %v235, 0.35355338
    %v266 = vmul.f32 %v238, 0.35355338
    %v267 = vmul.f32 %v243, 0.35355338
    %v268 = vmul.f32 %v246, 0.35355338
    %v269 = vmul.f32 %v251, 0.35355338
    %v270 = vmul.f32 %v254, 0.35355338
    %v271 = vmul.f32 %v259, 0.35355338
    %v272 = vmul.f32 %v262, 0.35355338
    %v273 = vadd.f32 %v265, %v91
    %v274 = vadd.f32 %v266, %v92
    %v275 = vadd.f32 %v267, %v93
    %v276 = vadd.f32 %v268, %v94
    %v277 = vadd.f32 %v269, %v95
    %v278 = vadd.f32 %v270, %v96
    %v279 = vadd.f32 %v271, %v97
    %v280 = vadd.f32 %v272, %v98
    %vm281 = vcmask 130048
    %v282 = vsel %vm281, %v273, -inf
    %283 = vmax.xlane.f32.xlu0 %v282
    %v284 = vpop.xlane.xlu0 %283
    %v285 = vsel %vm281, %v274, -inf
    %286 = vmax.xlane.f32.xlu0 %v285
    %v287 = vpop.xlane.xlu0 %286
    %v288 = vsel %vm281, %v275, -inf
    %289 = vmax.xlane.f32.xlu0 %v288
    %v290 = vpop.xlane.xlu0 %289
    %v291 = vsel %vm281, %v276, -inf
    %292 = vmax.xlane.f32.xlu0 %v291
    %v293 = vpop.xlane.xlu0 %292
    %v294 = vsel %vm281, %v277, -inf
    %295 = vmax.xlane.f32.xlu0 %v294
    %v296 = vpop.xlane.xlu0 %295
    %v297 = vsel %vm281, %v278, -inf
    %298 = vmax.xlane.f32.xlu0 %v297
    %v299 = vpop.xlane.xlu0 %298
    %v300 = vsel %vm281, %v279, -inf
    %301 = vmax.xlane.f32.xlu0 %v300
    %v302 = vpop.xlane.xlu0 %301
    %v303 = vsel %vm281, %v280, -inf
    %304 = vmax.xlane.f32.xlu0 %v303
    %v305 = vpop.xlane.xlu0 %304
    %v306 = vsub.f32 %v273, %v284
    %v307 = vsub.f32 %v274, %v287
    %v308 = vsub.f32 %v275, %v290
    %v309 = vsub.f32 %v276, %v293
    %v310 = vsub.f32 %v277, %v296
    %v311 = vsub.f32 %v278, %v299
    %v312 = vsub.f32 %v279, %v302
    %v313 = vsub.f32 %v280, %v305
    %v314 = vmul.f32 %v306, 1.442695
    %v315 = vpow.pop %v314
    %v316 = vmul.f32 %v307, 1.442695
    %v317 = vpow.pop %v316
    %v318 = vmul.f32 %v308, 1.442695
    %v319 = vpow.pop %v318
    %v320 = vmul.f32 %v309, 1.442695
    %v321 = vpow.pop %v320
    %v322 = vmul.f32 %v310, 1.442695
    %v323 = vpow.pop %v322
    %v324 = vmul.f32 %v311, 1.442695
    %v325 = vpow.pop %v324
    %v326 = vmul.f32 %v312, 1.442695
    %v327 = vpow.pop %v326
    %v328 = vmul.f32 %v313, 1.442695
    %v329 = vpow.pop %v328
    %v330 = vsel %vm281, %v315, 0.0
    %331 = vadd.xlane.f32.xlu0 %v330
    %v332 = vpop.xlane.xlu0 %331
    %v333 = vsel %vm281, %v317, 0.0
    %334 = vadd.xlane.f32.xlu0 %v333
    %v335 = vpop.xlane.xlu0 %334
    %v336 = vsel %vm281, %v319, 0.0
    %337 = vadd.xlane.f32.xlu0 %v336
    %v338 = vpop.xlane.xlu0 %337
    %v339 = vsel %vm281, %v321, 0.0
    %340 = vadd.xlane.f32.xlu0 %v339
    %v341 = vpop.xlane.xlu0 %340
    %v342 = vsel %vm281, %v323, 0.0
    %343 = vadd.xlane.f32.xlu0 %v342
    %v344 = vpop.xlane.xlu0 %343
    %v345 = vsel %vm281, %v325, 0.0
    %346 = vadd.xlane.f32.xlu0 %v345
    %v347 = vpop.xlane.xlu0 %346
    %v348 = vsel %vm281, %v327, 0.0
    %349 = vadd.xlane.f32.xlu0 %v348
    %v350 = vpop.xlane.xlu0 %349
    %v351 = vsel %vm281, %v329, 0.0
    %352 = vadd.xlane.f32.xlu0 %v351
    %v353 = vpop.xlane.xlu0 %352
    %v354 = vrcp.pop %v332
    %v355 = vmul.f32 %v315, %v354
    %v356 = vrcp.pop %v335
    %v357 = vmul.f32 %v317, %v356
    %v358 = vrcp.pop %v338
    %v359 = vmul.f32 %v319, %v358
    %v360 = vrcp.pop %v341
    %v361 = vmul.f32 %v321, %v360
    %v362 = vrcp.pop %v344
    %v363 = vmul.f32 %v323, %v362
    %v364 = vrcp.pop %v347
    %v365 = vmul.f32 %v325, %v364
    %v366 = vrcp.pop %v350
    %v367 = vmul.f32 %v327, %v366
    %v368 = vrcp.pop %v353
    %v369 = vmul.f32 %v329, %v368
    %v370 = vpack.c.bf16 %v357, %v355
    %v371 = vpack.c.bf16 %v361, %v359
    %v372 = vpack.c.bf16 %v365, %v363
    %v373 = vpack.c.bf16 %v369, %v367
    %374 = vrot.lane.b32.xlu0 %v181, 64
    %v375 = vpop.permute.xlu0 %374
    %v378 = vsel %vm281, %v370, 0
    %v381 = vsel %vm281, %v371, 0
    %v384 = vsel %vm281, %v372, 0
    %v387 = vsel %vm281, %v373, 0
    %389 = vmatprep.subr.bf16.mxu0 0
    %390 = vmatpush1.bf16.msra.mxu0 0
    %391 = vmatprep.subr.bf16.mxu0 0
    %392 = vmatpush1.bf16.msra.mxu0 0
    %393 = vmatprep.subr.bf16.mxu0 0
    %394 = vmatpush1.bf16.msra.mxu0 0
    %395 = vmatprep.subr.bf16.mxu0 0
    %396 = vmatpush1.bf16.msra.mxu0 0
    %397 = vmatprep.subr.bf16.mxu0 0
    %398 = vmatpush1.bf16.msra.mxu0 0
    %399 = vmatprep.subr.bf16.mxu0 0
    %400 = vmatpush1.bf16.msra.mxu0 0
    %401 = vmatprep.subr.bf16.mxu0 0
    %402 = vmatpush1.bf16.msra.mxu0 0
    %403 = vmatprep.subr.bf16.mxu0 0
    %404 = vmatpush1.bf16.msra.mxu0 %v375
    %405 = vmatprep.subr.bf16.mxu0 0
    %406 = vmatpush2.bf16.msra.mxu0 0
    %407 = vmatprep.subr.bf16.mxu0 0
    %408 = vmatpush2.bf16.msra.mxu0 0
    %409 = vmatprep.subr.bf16.mxu0 0
    %410 = vmatpush2.bf16.msra.mxu0 0
    %411 = vmatprep.subr.bf16.mxu0 0
    %412 = vmatpush2.bf16.msra.mxu0 0
    %413 = vmatprep.subr.bf16.mxu0 0
    %414 = vmatpush2.bf16.msra.mxu0 0
    %415 = vmatprep.subr.bf16.mxu0 0
    %416 = vmatpush2.bf16.msra.mxu0 0
    %417 = vmatprep.subr.bf16.mxu0 0
    %418 = vmatpush2.bf16.msra.mxu0 0
    %419 = vmatprep.subr.bf16.mxu0 0
    %420 = vmatpush2.bf16.msra.mxu0 0
    %421 = vmatprep.mubr.bf16.mxu0 0
    %422 = vmatmul.mubr.bf16.gmra.mxu0 %v378
    %v423 = vpop.f32.mrf.mxu0
    %v424 = vadd.f32 0.0, %v423
    %v425 = vpop.f32.mrf.mxu0
    %v426 = vpop.f32.mrf.mxu0
    %v427 = vadd.f32 0.0, %v426
    %v428 = vpop.f32.mrf.mxu0
    %429 = vmatprep.mubr.bf16.mxu0 0
    %430 = vmatmul.mubr.bf16.gmra.mxu0 %v381
    %v431 = vpop.f32.mrf.mxu0
    %v432 = vadd.f32 0.0, %v431
    %v433 = vpop.f32.mrf.mxu0
    %v434 = vpop.f32.mrf.mxu0
    %v435 = vadd.f32 0.0, %v434
    %v436 = vpop.f32.mrf.mxu0
    %437 = vmatprep.mubr.bf16.mxu0 0
    %438 = vmatmul.mubr.bf16.gmra.mxu0 %v384
    %v439 = vpop.f32.mrf.mxu0
    %v440 = vadd.f32 0.0, %v439
    %v441 = vpop.f32.mrf.mxu0
    %v442 = vpop.f32.mrf.mxu0
    %v443 = vadd.f32 0.0, %v442
    %v444 = vpop.f32.mrf.mxu0
    %445 = vmatprep.mubr.bf16.mxu0 0
    %446 = vmatmul.mubr.bf16.gmra.mxu0 %v387
    %v447 = vpop.f32.mrf.mxu0
    %v448 = vadd.f32 0.0, %v447
    %v449 = vpop.f32.mrf.mxu0
    %v450 = vpop.f32.mrf.mxu0
    %v451 = vadd.f32 0.0, %v450
    %v452 = vpop.f32.mrf.mxu0
    %453 = vdwg.mxu0
    %v454 = vmul.f32 %v424, %v83
    %v455 = vmul.f32 %v427, %v84
    %v456 = vmul.f32 %v432, %v85
    %v457 = vmul.f32 %v435, %v86
    %v458 = vmul.f32 %v440, %v87
    %v459 = vmul.f32 %v443, %v88
    %v460 = vmul.f32 %v448, %v89
    %v461 = vmul.f32 %v451, %v90
    %v462 = vadd.f32 %v454, %v456
    %v463 = vadd.f32 %v455, %v457
    %v464 = vadd.f32 %v462, %v458
    %v465 = vadd.f32 %v463, %v459
    %v466 = vadd.f32 %v464, %v460
    %v467 = vadd.f32 %v465, %v461
    %v468 = vpack.c.bf16 %v467, %v466
    %v469 = vlaneseq
    %v470 = vshrl.u32 %v469, 7
    %v471 = vsub.s32 1, %v470
    %v472 = vrot.slane %v65, %v471
    %v473 = vunpack.c.h.b16 %v67
    %v474 = vunpack.c.h.b16 %v71
    %v475 = vunpack.c.h.b16 %v75
    %v476 = vunpack.c.h.b16 %v79
    %v477 = vpack.c.b16 %v474, %v473
    %v478 = vpack.c.b16 %v476, %v475
    %v482 = vsel %vm124, %v468, 0
    %484 = vmatprep.subr.bf16.mxu0 0
    %485 = vmatpush1.bf16.msra.mxu0 0
    %486 = vmatprep.subr.bf16.mxu0 0
    %487 = vmatpush1.bf16.msra.mxu0 0
    %488 = vmatprep.subr.bf16.mxu0 0
    %489 = vmatpush1.bf16.msra.mxu0 0
    %490 = vmatprep.subr.bf16.mxu0 0
    %491 = vmatpush1.bf16.msra.mxu0 0
    %492 = vmatprep.subr.bf16.mxu0 0
    %493 = vmatpush1.bf16.msra.mxu0 0
    %494 = vmatprep.subr.bf16.mxu0 0
    %495 = vmatpush1.bf16.msra.mxu0 0
    %496 = vmatprep.subr.bf16.mxu0 0
    %497 = vmatpush1.bf16.msra.mxu0 %v478
    %498 = vmatprep.subr.bf16.mxu0 0
    %499 = vmatpush1.bf16.msra.mxu0 %v477
    %500 = vmatprep.subr.bf16.mxu0 0
    %501 = vmatpush2.bf16.msra.mxu0 0
    %502 = vmatprep.subr.bf16.mxu0 0
    %503 = vmatpush2.bf16.msra.mxu0 0
    %504 = vmatprep.subr.bf16.mxu0 0
    %505 = vmatpush2.bf16.msra.mxu0 0
    %506 = vmatprep.subr.bf16.mxu0 0
    %507 = vmatpush2.bf16.msra.mxu0 0
    %508 = vmatprep.subr.bf16.mxu0 0
    %509 = vmatpush2.bf16.msra.mxu0 0
    %510 = vmatprep.subr.bf16.mxu0 0
    %511 = vmatpush2.bf16.msra.mxu0 0
    %512 = vmatprep.subr.bf16.mxu0 0
    %513 = vmatpush2.bf16.msra.mxu0 0
    %514 = vmatprep.subr.bf16.mxu0 0
    %515 = vmatpush2.bf16.msra.mxu0 0
    %516 = vmatprep.mubr.bf16.mxu0 0
    %517 = vmatmul.mubr.bf16.gmra.mxu0 %v482
    %v518 = vpop.f32.mrf.mxu0
    %v519 = vadd.f32 %v472, %v518
    %v520 = vpop.f32.mrf.mxu0
    %v521 = vpop.f32.mrf.mxu0
    %v522 = vadd.f32 %v472, %v521
    %v523 = vpop.f32.mrf.mxu0
    %524 = vdwg.mxu0
    %v525 = vadd.f32 %v63, %v519
    %v526 = vadd.f32 %v64, %v522
    %v527 = vsel %vm124, %v525, 0.0
    %528 = vadd.xlane.f32.xlu0 %v527
    %v529 = vpop.xlane.xlu0 %528
    %v530 = vsel %vm124, %v526, 0.0
    %531 = vadd.xlane.f32.xlu0 %v530
    %v532 = vpop.xlane.xlu0 %531
    %v533 = vrcp.pop 32.0
    %v534 = vmul.f32 %v529, %v533
    %v535 = vmul.f32 %v532, %v533
    %v536 = vsub.f32 %v525, %v534
    %v537 = vsub.f32 %v526, %v535
    %v538 = vmul.f32 %v536, %v536
    %v539 = vmul.f32 %v537, %v537
    %v540 = vsel %vm124, %v538, 0.0
    %541 = vadd.xlane.f32.xlu0 %v540
    %v542 = vpop.xlane.xlu0 %541
    %v543 = vsel %vm124, %v539, 0.0
    %544 = vadd.xlane.f32.xlu0 %v543
    %v545 = vpop.xlane.xlu0 %544
    %v546 = vmul.f32 %v542, %v533
    %v547 = vmul.f32 %v545, %v533
    %v548 = vadd.f32 %v546, 1e-05
    %v549 = vadd.f32 %v547, 1e-05
    %v550 = vrsqrt.pop %v548
    %v551 = vrsqrt.pop %v549
    %v552 = vmul.f32 %v536, %v550
    %v553 = vmul.f32 %v537, %v551
    %v554 = vlaneseq
    %v555 = vshrl.u32 %v554, 7
    %v556 = vsub.s32 7, %v555
    %v557 = vrot.slane %v65, %v556
    %v558 = vmul.f32 %v552, %v557
    %v559 = vmul.f32 %v553, %v557
    %v560 = vlaneseq
    %v561 = vshrl.u32 %v560, 7
    %v562 = vsub.s32 0, %v561
    %v563 = vrot.slane %v66, %v562
    %v564 = vadd.f32 %v558, %v563
    %v565 = vadd.f32 %v559, %v563
    %v566 = vpack.c.bf16 %v565, %v564
    %v567 = vlaneseq
    %v568 = vshrl.u32 %v567, 7
    %v569 = vsub.s32 2, %v568
    %v570 = vrot.slane %v65, %v569
    %v575 = vunpack.c.l.b16 %v68
    %v576 = vunpack.c.l.b16 %v72
    %v577 = vunpack.c.l.b16 %v76
    %v578 = vunpack.c.l.b16 %v80
    %v579 = vpack.c.b16 %v576, %v575
    %v580 = vpack.c.b16 %v578, %v577
    %v584 = vsel %vm124, %v566, 0
    %586 = vmatprep.subr.bf16.mxu0 0
    %587 = vmatpush1.bf16.msra.mxu0 0
    %588 = vmatprep.subr.bf16.mxu0 0
    %589 = vmatpush1.bf16.msra.mxu0 0
    %590 = vmatprep.subr.bf16.mxu0 0
    %591 = vmatpush1.bf16.msra.mxu0 0
    %592 = vmatprep.subr.bf16.mxu0 0
    %593 = vmatpush1.bf16.msra.mxu0 0
    %594 = vmatprep.subr.bf16.mxu0 0
    %595 = vmatpush1.bf16.msra.mxu0 0
    %596 = vmatprep.subr.bf16.mxu0 0
    %597 = vmatpush1.bf16.msra.mxu0 0
    %598 = vmatprep.subr.bf16.mxu0 0
    %599 = vmatpush1.bf16.msra.mxu0 %v580
    %600 = vmatprep.subr.bf16.mxu0 0
    %601 = vmatpush1.bf16.msra.mxu0 %v579
    %602 = vmatprep.subr.bf16.mxu0 0
    %603 = vmatpush2.bf16.msra.mxu0 0
    %604 = vmatprep.subr.bf16.mxu0 0
    %605 = vmatpush2.bf16.msra.mxu0 0
    %606 = vmatprep.subr.bf16.mxu0 0
    %607 = vmatpush2.bf16.msra.mxu0 0
    %608 = vmatprep.subr.bf16.mxu0 0
    %609 = vmatpush2.bf16.msra.mxu0 0
    %610 = vmatprep.subr.bf16.mxu0 0
    %611 = vmatpush2.bf16.msra.mxu0 0
    %612 = vmatprep.subr.bf16.mxu0 0
    %613 = vmatpush2.bf16.msra.mxu0 0
    %614 = vmatprep.subr.bf16.mxu0 0
    %615 = vmatpush2.bf16.msra.mxu0 0
    %616 = vmatprep.subr.bf16.mxu0 0
    %617 = vmatpush2.bf16.msra.mxu0 0
    %618 = vmatprep.mubr.bf16.mxu0 0
    %619 = vmatmul.mubr.bf16.gmra.mxu0 %v584
    %v620 = vpop.f32.mrf.mxu0
    %v621 = vadd.f32 %v570, %v620
    %v622 = vpop.f32.mrf.mxu0
    %v623 = vpop.f32.mrf.mxu0
    %v624 = vadd.f32 %v570, %v623
    %v625 = vpop.f32.mrf.mxu0
    %626 = vdwg.mxu0
    %v627 = vld [vmem:[%s1] sm:$0xff]
    %v628 = vld [vmem:[%s1 + $0x8] sm:$0xff]
    %v629 = vld [vmem:[%s1 + $0x10] sm:$0xff]
    %v630 = vpack.c.bf16 %v628, %v627
    %v631 = vpack.c.bf16 %v629, %v629
    %v632 = vlaneseq
    %v633 = vshrl.u32 %v632, 7
    %v634 = vsub.s32 3, %v633
    %v635 = vrot.slane %v65, %v634
    %v636 = vunpack.c.h.b16 %v68
    %v637 = vunpack.c.h.b16 %v72
    %v638 = vunpack.c.h.b16 %v76
    %v639 = vunpack.c.h.b16 %v80
    %v640 = vpack.c.b16 %v637, %v636
    %v641 = vpack.c.b16 %v639, %v638
    %v645 = vsel %vm124, %v630, 0
    %v648 = vsel %vm124, %v631, 0
    %650 = vmatprep.subr.bf16.mxu0 0
    %651 = vmatpush1.bf16.msra.mxu0 0
    %652 = vmatprep.subr.bf16.mxu0 0
    %653 = vmatpush1.bf16.msra.mxu0 0
    %654 = vmatprep.subr.bf16.mxu0 0
    %655 = vmatpush1.bf16.msra.mxu0 0
    %656 = vmatprep.subr.bf16.mxu0 0
    %657 = vmatpush1.bf16.msra.mxu0 0
    %658 = vmatprep.subr.bf16.mxu0 0
    %659 = vmatpush1.bf16.msra.mxu0 0
    %660 = vmatprep.subr.bf16.mxu0 0
    %661 = vmatpush1.bf16.msra.mxu0 0
    %662 = vmatprep.subr.bf16.mxu0 0
    %663 = vmatpush1.bf16.msra.mxu0 %v641
    %664 = vmatprep.subr.bf16.mxu0 0
    %665 = vmatpush1.bf16.msra.mxu0 %v640
    %666 = vmatprep.subr.bf16.mxu0 0
    %667 = vmatpush2.bf16.msra.mxu0 0
    %668 = vmatprep.subr.bf16.mxu0 0
    %669 = vmatpush2.bf16.msra.mxu0 0
    %670 = vmatprep.subr.bf16.mxu0 0
    %671 = vmatpush2.bf16.msra.mxu0 0
    %672 = vmatprep.subr.bf16.mxu0 0
    %673 = vmatpush2.bf16.msra.mxu0 0
    %674 = vmatprep.subr.bf16.mxu0 0
    %675 = vmatpush2.bf16.msra.mxu0 0
    %676 = vmatprep.subr.bf16.mxu0 0
    %677 = vmatpush2.bf16.msra.mxu0 0
    %678 = vmatprep.subr.bf16.mxu0 0
    %679 = vmatpush2.bf16.msra.mxu0 0
    %680 = vmatprep.subr.bf16.mxu0 0
    %681 = vmatpush2.bf16.msra.mxu0 0
    %682 = vmatprep.mubr.bf16.mxu0 0
    %683 = vmatmul.mubr.bf16.gmra.mxu0 %v645
    %v684 = vpop.f32.mrf.mxu0
    %v685 = vadd.f32 %v635, %v684
    %v686 = vpop.f32.mrf.mxu0
    %v687 = vpop.f32.mrf.mxu0
    %v688 = vadd.f32 %v635, %v687
    %v689 = vpop.f32.mrf.mxu0
    %690 = vmatprep.mubr.bf16.mxu0 0
    %691 = vmatmul.mubr.bf16.gmra.mxu0 %v648
    %v692 = vpop.f32.mrf.mxu0
    %v693 = vadd.f32 %v635, %v692
    %v694 = vpop.f32.mrf.mxu0
    %v695 = vpop.f32.mrf.mxu0
    %v696 = vpop.f32.mrf.mxu0
    %697 = vdwg.mxu0
    %v698 = vmul.f32 %v621, %v83
    %v699 = vmul.f32 %v624, %v84
    %v700 = vmul.f32 %v621, %v85
    %v701 = vmul.f32 %v624, %v86
    %v702 = vmul.f32 %v621, %v87
    %v703 = vmul.f32 %v624, %v88
    %v704 = vmul.f32 %v621, %v89
    %v705 = vmul.f32 %v624, %v90
    %v706 = vpack.c.bf16 %v699, %v698
    %v707 = vpack.c.bf16 %v701, %v700
    %v708 = vpack.c.bf16 %v703, %v702
    %v709 = vpack.c.bf16 %v705, %v704
    %v710 = vpack.c.bf16 %v688, %v685
    %v711 = vpack.c.bf16 %v693, %v693
    %v713 = vsel %vm124, %v706, 0
    %v716 = vsel %vm124, %v707, 0
    %v719 = vsel %vm124, %v708, 0
    %v722 = vsel %vm124, %v709, 0
    %v725 = vsel %vm124, %v710, 0
    %v728 = vsel %vm124, %v711, 0
    %730 = vmatprep.subr.bf16.mxu0 0
    %731 = vmatpush1.bf16.xpose.msra.mxu0 0
    %732 = vmatprep.subr.bf16.mxu0 0
    %733 = vmatpush1.bf16.xpose.msra.mxu0 0
    %734 = vmatprep.subr.bf16.mxu0 0
    %735 = vmatpush1.bf16.xpose.msra.mxu0 0
    %736 = vmatprep.subr.bf16.mxu0 0
    %737 = vmatpush1.bf16.xpose.msra.mxu0 0
    %738 = vmatprep.subr.bf16.mxu0 0
    %739 = vmatpush1.bf16.xpose.msra.mxu0 0
    %740 = vmatprep.subr.bf16.mxu0 0
    %741 = vmatpush1.bf16.xpose.msra.mxu0 0
    %742 = vmatprep.subr.bf16.mxu0 0
    %743 = vmatpush1.bf16.xpose.msra.mxu0 %v728
    %744 = vmatprep.subr.bf16.mxu0 0
    %745 = vmatpush1.bf16.xpose.msra.mxu0 %v725
    %746 = vmatprep.subr.bf16.mxu0 0
    %747 = vmatpush2.bf16.xpose.msra.mxu0 0
    %748 = vmatprep.subr.bf16.mxu0 0
    %749 = vmatpush2.bf16.xpose.msra.mxu0 0
    %750 = vmatprep.subr.bf16.mxu0 0
    %751 = vmatpush2.bf16.xpose.msra.mxu0 0
    %752 = vmatprep.subr.bf16.mxu0 0
    %753 = vmatpush2.bf16.xpose.msra.mxu0 0
    %754 = vmatprep.subr.bf16.mxu0 0
    %755 = vmatpush2.bf16.xpose.msra.mxu0 0
    %756 = vmatprep.subr.bf16.mxu0 0
    %757 = vmatpush2.bf16.xpose.msra.mxu0 0
    %758 = vmatprep.subr.bf16.mxu0 0
    %759 = vmatpush2.bf16.xpose.msra.mxu0 0
    %760 = vmatprep.subr.bf16.mxu0 0
    %761 = vmatpush2.bf16.xpose.msra.mxu0 0
    %762 = vmatprep.mubr.bf16.mxu0 0
    %763 = vmatmul.mubr.bf16.gmra.mxu0 %v713
    %v764 = vpop.f32.mrf.mxu0
    %v765 = vadd.f32 0.0, %v764
    %v766 = vpop.f32.mrf.mxu0
    %v767 = vpop.f32.mrf.mxu0
    %v768 = vadd.f32 0.0, %v767
    %v769 = vpop.f32.mrf.mxu0
    %770 = vmatprep.mubr.bf16.mxu0 0
    %771 = vmatmul.mubr.bf16.gmra.mxu0 %v716
    %v772 = vpop.f32.mrf.mxu0
    %v773 = vadd.f32 0.0, %v772
    %v774 = vpop.f32.mrf.mxu0
    %v775 = vpop.f32.mrf.mxu0
    %v776 = vadd.f32 0.0, %v775
    %v777 = vpop.f32.mrf.mxu0
    %778 = vmatprep.mubr.bf16.mxu0 0
    %779 = vmatmul.mubr.bf16.gmra.mxu0 %v719
    %v780 = vpop.f32.mrf.mxu0
    %v781 = vadd.f32 0.0, %v780
    %v782 = vpop.f32.mrf.mxu0
    %v783 = vpop.f32.mrf.mxu0
    %v784 = vadd.f32 0.0, %v783
    %v785 = vpop.f32.mrf.mxu0
    %786 = vmatprep.mubr.bf16.mxu0 0
    %787 = vmatmul.mubr.bf16.gmra.mxu0 %v722
    %v788 = vpop.f32.mrf.mxu0
    %v789 = vadd.f32 0.0, %v788
    %v790 = vpop.f32.mrf.mxu0
    %v791 = vpop.f32.mrf.mxu0
    %v792 = vadd.f32 0.0, %v791
    %v793 = vpop.f32.mrf.mxu0
    %794 = vdwg.mxu0
    %v795 = vmul.f32 %v765, 0.35355338
    %v796 = vmul.f32 %v768, 0.35355338
    %v797 = vmul.f32 %v773, 0.35355338
    %v798 = vmul.f32 %v776, 0.35355338
    %v799 = vmul.f32 %v781, 0.35355338
    %v800 = vmul.f32 %v784, 0.35355338
    %v801 = vmul.f32 %v789, 0.35355338
    %v802 = vmul.f32 %v792, 0.35355338
    %v803 = vadd.f32 %v795, %v99
    %v804 = vadd.f32 %v796, %v100
    %v805 = vadd.f32 %v797, %v101
    %v806 = vadd.f32 %v798, %v102
    %v807 = vadd.f32 %v799, %v103
    %v808 = vadd.f32 %v800, %v104
    %v809 = vadd.f32 %v801, %v105
    %v810 = vadd.f32 %v802, %v106
    %vm811 = vcmask 195584
    %v812 = vsel %vm811, %v803, -inf
    %813 = vmax.xlane.f32.xlu0 %v812
    %v814 = vpop.xlane.xlu0 %813
    %v815 = vsel %vm811, %v804, -inf
    %816 = vmax.xlane.f32.xlu0 %v815
    %v817 = vpop.xlane.xlu0 %816
    %v818 = vsel %vm811, %v805, -inf
    %819 = vmax.xlane.f32.xlu0 %v818
    %v820 = vpop.xlane.xlu0 %819
    %v821 = vsel %vm811, %v806, -inf
    %822 = vmax.xlane.f32.xlu0 %v821
    %v823 = vpop.xlane.xlu0 %822
    %v824 = vsel %vm811, %v807, -inf
    %825 = vmax.xlane.f32.xlu0 %v824
    %v826 = vpop.xlane.xlu0 %825
    %v827 = vsel %vm811, %v808, -inf
    %828 = vmax.xlane.f32.xlu0 %v827
    %v829 = vpop.xlane.xlu0 %828
    %v830 = vsel %vm811, %v809, -inf
    %831 = vmax.xlane.f32.xlu0 %v830
    %v832 = vpop.xlane.xlu0 %831
    %v833 = vsel %vm811, %v810, -inf
    %834 = vmax.xlane.f32.xlu0 %v833
    %v835 = vpop.xlane.xlu0 %834
    %v836 = vsub.f32 %v803, %v814
    %v837 = vsub.f32 %v804, %v817
    %v838 = vsub.f32 %v805, %v820
    %v839 = vsub.f32 %v806, %v823
    %v840 = vsub.f32 %v807, %v826
    %v841 = vsub.f32 %v808, %v829
    %v842 = vsub.f32 %v809, %v832
    %v843 = vsub.f32 %v810, %v835
    %v844 = vmul.f32 %v836, 1.442695
    %v845 = vpow.pop %v844
    %v846 = vmul.f32 %v837, 1.442695
    %v847 = vpow.pop %v846
    %v848 = vmul.f32 %v838, 1.442695
    %v849 = vpow.pop %v848
    %v850 = vmul.f32 %v839, 1.442695
    %v851 = vpow.pop %v850
    %v852 = vmul.f32 %v840, 1.442695
    %v853 = vpow.pop %v852
    %v854 = vmul.f32 %v841, 1.442695
    %v855 = vpow.pop %v854
    %v856 = vmul.f32 %v842, 1.442695
    %v857 = vpow.pop %v856
    %v858 = vmul.f32 %v843, 1.442695
    %v859 = vpow.pop %v858
    %v860 = vsel %vm811, %v845, 0.0
    %861 = vadd.xlane.f32.xlu0 %v860
    %v862 = vpop.xlane.xlu0 %861
    %v863 = vsel %vm811, %v847, 0.0
    %864 = vadd.xlane.f32.xlu0 %v863
    %v865 = vpop.xlane.xlu0 %864
    %v866 = vsel %vm811, %v849, 0.0
    %867 = vadd.xlane.f32.xlu0 %v866
    %v868 = vpop.xlane.xlu0 %867
    %v869 = vsel %vm811, %v851, 0.0
    %870 = vadd.xlane.f32.xlu0 %v869
    %v871 = vpop.xlane.xlu0 %870
    %v872 = vsel %vm811, %v853, 0.0
    %873 = vadd.xlane.f32.xlu0 %v872
    %v874 = vpop.xlane.xlu0 %873
    %v875 = vsel %vm811, %v855, 0.0
    %876 = vadd.xlane.f32.xlu0 %v875
    %v877 = vpop.xlane.xlu0 %876
    %v878 = vsel %vm811, %v857, 0.0
    %879 = vadd.xlane.f32.xlu0 %v878
    %v880 = vpop.xlane.xlu0 %879
    %v881 = vsel %vm811, %v859, 0.0
    %882 = vadd.xlane.f32.xlu0 %v881
    %v883 = vpop.xlane.xlu0 %882
    %v884 = vrcp.pop %v862
    %v885 = vmul.f32 %v845, %v884
    %v886 = vrcp.pop %v865
    %v887 = vmul.f32 %v847, %v886
    %v888 = vrcp.pop %v868
    %v889 = vmul.f32 %v849, %v888
    %v890 = vrcp.pop %v871
    %v891 = vmul.f32 %v851, %v890
    %v892 = vrcp.pop %v874
    %v893 = vmul.f32 %v853, %v892
    %v894 = vrcp.pop %v877
    %v895 = vmul.f32 %v855, %v894
    %v896 = vrcp.pop %v880
    %v897 = vmul.f32 %v857, %v896
    %v898 = vrcp.pop %v883
    %v899 = vmul.f32 %v859, %v898
    %v900 = vpack.c.bf16 %v887, %v885
    %v901 = vpack.c.bf16 %v891, %v889
    %v902 = vpack.c.bf16 %v895, %v893
    %v903 = vpack.c.bf16 %v899, %v897
    %906 = vrot.lane.b32.xlu0 %v710, 96
    %v907 = vpop.permute.xlu0 %906
    %908 = vrot.lane.b32.xlu0 %v711, 96
    %v909 = vpop.permute.xlu0 %908
    %v912 = vsel %vm811, %v900, 0
    %v915 = vsel %vm811, %v901, 0
    %v918 = vsel %vm811, %v902, 0
    %v921 = vsel %vm811, %v903, 0
    %vm923 = vcmask 1043456
    %v925 = vsel %vm923, %v909, 0
    %927 = vmatprep.subr.bf16.mxu0 0
    %928 = vmatpush1.bf16.msra.mxu0 0
    %929 = vmatprep.subr.bf16.mxu0 0
    %930 = vmatpush1.bf16.msra.mxu0 0
    %931 = vmatprep.subr.bf16.mxu0 0
    %932 = vmatpush1.bf16.msra.mxu0 0
    %933 = vmatprep.subr.bf16.mxu0 0
    %934 = vmatpush1.bf16.msra.mxu0 0
    %935 = vmatprep.subr.bf16.mxu0 0
    %936 = vmatpush1.bf16.msra.mxu0 0
    %937 = vmatprep.subr.bf16.mxu0 0
    %938 = vmatpush1.bf16.msra.mxu0 0
    %939 = vmatprep.subr.bf16.mxu0 0
    %940 = vmatpush1.bf16.msra.mxu0 %v925
    %941 = vmatprep.subr.bf16.mxu0 0
    %942 = vmatpush1.bf16.msra.mxu0 %v907
    %943 = vmatprep.subr.bf16.mxu0 0
    %944 = vmatpush2.bf16.msra.mxu0 0
    %945 = vmatprep.subr.bf16.mxu0 0
    %946 = vmatpush2.bf16.msra.mxu0 0
    %947 = vmatprep.subr.bf16.mxu0 0
    %948 = vmatpush2.bf16.msra.mxu0 0
    %949 = vmatprep.subr.bf16.mxu0 0
    %950 = vmatpush2.bf16.msra.mxu0 0
    %951 = vmatprep.subr.bf16.mxu0 0
    %952 = vmatpush2.bf16.msra.mxu0 0
    %953 = vmatprep.subr.bf16.mxu0 0
    %954 = vmatpush2.bf16.msra.mxu0 0
    %955 = vmatprep.subr.bf16.mxu0 0
    %956 = vmatpush2.bf16.msra.mxu0 0
    %957 = vmatprep.subr.bf16.mxu0 0
    %958 = vmatpush2.bf16.msra.mxu0 0
    %959 = vmatprep.mubr.bf16.mxu0 0
    %960 = vmatmul.mubr.bf16.gmra.mxu0 %v912
    %v961 = vpop.f32.mrf.mxu0
    %v962 = vadd.f32 0.0, %v961
    %v963 = vpop.f32.mrf.mxu0
    %v964 = vpop.f32.mrf.mxu0
    %v965 = vadd.f32 0.0, %v964
    %v966 = vpop.f32.mrf.mxu0
    %967 = vmatprep.mubr.bf16.mxu0 0
    %968 = vmatmul.mubr.bf16.gmra.mxu0 %v915
    %v969 = vpop.f32.mrf.mxu0
    %v970 = vadd.f32 0.0, %v969
    %v971 = vpop.f32.mrf.mxu0
    %v972 = vpop.f32.mrf.mxu0
    %v973 = vadd.f32 0.0, %v972
    %v974 = vpop.f32.mrf.mxu0
    %975 = vmatprep.mubr.bf16.mxu0 0
    %976 = vmatmul.mubr.bf16.gmra.mxu0 %v918
    %v977 = vpop.f32.mrf.mxu0
    %v978 = vadd.f32 0.0, %v977
    %v979 = vpop.f32.mrf.mxu0
    %v980 = vpop.f32.mrf.mxu0
    %v981 = vadd.f32 0.0, %v980
    %v982 = vpop.f32.mrf.mxu0
    %983 = vmatprep.mubr.bf16.mxu0 0
    %984 = vmatmul.mubr.bf16.gmra.mxu0 %v921
    %v985 = vpop.f32.mrf.mxu0
    %v986 = vadd.f32 0.0, %v985
    %v987 = vpop.f32.mrf.mxu0
    %v988 = vpop.f32.mrf.mxu0
    %v989 = vadd.f32 0.0, %v988
    %v990 = vpop.f32.mrf.mxu0
    %991 = vdwg.mxu0
    %v992 = vmul.f32 %v962, %v83
    %v993 = vmul.f32 %v965, %v84
    %v994 = vmul.f32 %v970, %v85
    %v995 = vmul.f32 %v973, %v86
    %v996 = vmul.f32 %v978, %v87
    %v997 = vmul.f32 %v981, %v88
    %v998 = vmul.f32 %v986, %v89
    %v999 = vmul.f32 %v989, %v90
    %v1000 = vadd.f32 %v992, %v994
    %v1001 = vadd.f32 %v993, %v995
    %v1002 = vadd.f32 %v1000, %v996
    %v1003 = vadd.f32 %v1001, %v997
    %v1004 = vadd.f32 %v1002, %v998
    %v1005 = vadd.f32 %v1003, %v999
    %v1006 = vpack.c.bf16 %v1005, %v1004
    %v1007 = vlaneseq
    %v1008 = vshrl.u32 %v1007, 7
    %v1009 = vsub.s32 4, %v1008
    %v1010 = vrot.slane %v65, %v1009
    %v1015 = vunpack.c.l.b16 %v69
    %v1016 = vunpack.c.l.b16 %v73
    %v1017 = vunpack.c.l.b16 %v77
    %v1018 = vunpack.c.l.b16 %v81
    %v1019 = vpack.c.b16 %v1016, %v1015
    %v1020 = vpack.c.b16 %v1018, %v1017
    %v1024 = vsel %vm124, %v1006, 0
    %1026 = vmatprep.subr.bf16.mxu0 0
    %1027 = vmatpush1.bf16.msra.mxu0 0
    %1028 = vmatprep.subr.bf16.mxu0 0
    %1029 = vmatpush1.bf16.msra.mxu0 0
    %1030 = vmatprep.subr.bf16.mxu0 0
    %1031 = vmatpush1.bf16.msra.mxu0 0
    %1032 = vmatprep.subr.bf16.mxu0 0
    %1033 = vmatpush1.bf16.msra.mxu0 0
    %1034 = vmatprep.subr.bf16.mxu0 0
    %1035 = vmatpush1.bf16.msra.mxu0 0
    %1036 = vmatprep.subr.bf16.mxu0 0
    %1037 = vmatpush1.bf16.msra.mxu0 0
    %1038 = vmatprep.subr.bf16.mxu0 0
    %1039 = vmatpush1.bf16.msra.mxu0 %v1020
    %1040 = vmatprep.subr.bf16.mxu0 0
    %1041 = vmatpush1.bf16.msra.mxu0 %v1019
    %1042 = vmatprep.subr.bf16.mxu0 0
    %1043 = vmatpush2.bf16.msra.mxu0 0
    %1044 = vmatprep.subr.bf16.mxu0 0
    %1045 = vmatpush2.bf16.msra.mxu0 0
    %1046 = vmatprep.subr.bf16.mxu0 0
    %1047 = vmatpush2.bf16.msra.mxu0 0
    %1048 = vmatprep.subr.bf16.mxu0 0
    %1049 = vmatpush2.bf16.msra.mxu0 0
    %1050 = vmatprep.subr.bf16.mxu0 0
    %1051 = vmatpush2.bf16.msra.mxu0 0
    %1052 = vmatprep.subr.bf16.mxu0 0
    %1053 = vmatpush2.bf16.msra.mxu0 0
    %1054 = vmatprep.subr.bf16.mxu0 0
    %1055 = vmatpush2.bf16.msra.mxu0 0
    %1056 = vmatprep.subr.bf16.mxu0 0
    %1057 = vmatpush2.bf16.msra.mxu0 0
    %1058 = vmatprep.mubr.bf16.mxu0 0
    %1059 = vmatmul.mubr.bf16.gmra.mxu0 %v1024
    %v1060 = vpop.f32.mrf.mxu0
    %v1061 = vadd.f32 %v1010, %v1060
    %v1062 = vpop.f32.mrf.mxu0
    %v1063 = vpop.f32.mrf.mxu0
    %v1064 = vadd.f32 %v1010, %v1063
    %v1065 = vpop.f32.mrf.mxu0
    %1066 = vdwg.mxu0
    %v1067 = vadd.f32 %v564, %v1061
    %v1068 = vadd.f32 %v565, %v1064
    %v1069 = vsel %vm124, %v1067, 0.0
    %1070 = vadd.xlane.f32.xlu0 %v1069
    %v1071 = vpop.xlane.xlu0 %1070
    %v1072 = vsel %vm124, %v1068, 0.0
    %1073 = vadd.xlane.f32.xlu0 %v1072
    %v1074 = vpop.xlane.xlu0 %1073
    %v1075 = vmul.f32 %v1071, %v533
    %v1076 = vmul.f32 %v1074, %v533
    %v1077 = vsub.f32 %v1067, %v1075
    %v1078 = vsub.f32 %v1068, %v1076
    %v1079 = vmul.f32 %v1077, %v1077
    %v1080 = vmul.f32 %v1078, %v1078
    %v1081 = vsel %vm124, %v1079, 0.0
    %1082 = vadd.xlane.f32.xlu0 %v1081
    %v1083 = vpop.xlane.xlu0 %1082
    %v1084 = vsel %vm124, %v1080, 0.0
    %1085 = vadd.xlane.f32.xlu0 %v1084
    %v1086 = vpop.xlane.xlu0 %1085
    %v1087 = vmul.f32 %v1083, %v533
    %v1088 = vmul.f32 %v1086, %v533
    %v1089 = vadd.f32 %v1087, 1e-05
    %v1090 = vadd.f32 %v1088, 1e-05
    %v1091 = vrsqrt.pop %v1089
    %v1092 = vrsqrt.pop %v1090
    %v1093 = vmul.f32 %v1077, %v1091
    %v1094 = vmul.f32 %v1078, %v1092
    %v1095 = vlaneseq
    %v1096 = vshrl.u32 %v1095, 7
    %v1097 = vsub.s32 1, %v1096
    %v1098 = vrot.slane %v66, %v1097
    %v1099 = vmul.f32 %v1093, %v1098
    %v1100 = vmul.f32 %v1094, %v1098
    %v1101 = vlaneseq
    %v1102 = vshrl.u32 %v1101, 7
    %v1103 = vsub.s32 2, %v1102
    %v1104 = vrot.slane %v66, %v1103
    %v1105 = vadd.f32 %v1099, %v1104
    %v1106 = vadd.f32 %v1100, %v1104
    %v1107 = vpack.c.bf16 %v1106, %v1105
    %v1108 = vlaneseq
    %v1109 = vshrl.u32 %v1108, 7
    %v1110 = vsub.s32 5, %v1109
    %v1111 = vrot.slane %v65, %v1110
    %v1112 = vunpack.c.h.b16 %v69
    %v1113 = vunpack.c.h.b16 %v73
    %v1114 = vunpack.c.h.b16 %v77
    %v1115 = vunpack.c.h.b16 %v81
    %v1116 = vpack.c.b16 %v1113, %v1112
    %v1117 = vpack.c.b16 %v1115, %v1114
    %v1121 = vsel %vm124, %v1107, 0
    %1123 = vmatprep.subr.bf16.mxu0 0
    %1124 = vmatpush1.bf16.msra.mxu0 0
    %1125 = vmatprep.subr.bf16.mxu0 0
    %1126 = vmatpush1.bf16.msra.mxu0 0
    %1127 = vmatprep.subr.bf16.mxu0 0
    %1128 = vmatpush1.bf16.msra.mxu0 0
    %1129 = vmatprep.subr.bf16.mxu0 0
    %1130 = vmatpush1.bf16.msra.mxu0 0
    %1131 = vmatprep.subr.bf16.mxu0 0
    %1132 = vmatpush1.bf16.msra.mxu0 0
    %1133 = vmatprep.subr.bf16.mxu0 0
    %1134 = vmatpush1.bf16.msra.mxu0 0
    %1135 = vmatprep.subr.bf16.mxu0 0
    %1136 = vmatpush1.bf16.msra.mxu0 %v1117
    %1137 = vmatprep.subr.bf16.mxu0 0
    %1138 = vmatpush1.bf16.msra.mxu0 %v1116
    %1139 = vmatprep.subr.bf16.mxu0 0
    %1140 = vmatpush2.bf16.msra.mxu0 0
    %1141 = vmatprep.subr.bf16.mxu0 0
    %1142 = vmatpush2.bf16.msra.mxu0 0
    %1143 = vmatprep.subr.bf16.mxu0 0
    %1144 = vmatpush2.bf16.msra.mxu0 0
    %1145 = vmatprep.subr.bf16.mxu0 0
    %1146 = vmatpush2.bf16.msra.mxu0 0
    %1147 = vmatprep.subr.bf16.mxu0 0
    %1148 = vmatpush2.bf16.msra.mxu0 0
    %1149 = vmatprep.subr.bf16.mxu0 0
    %1150 = vmatpush2.bf16.msra.mxu0 0
    %1151 = vmatprep.subr.bf16.mxu0 0
    %1152 = vmatpush2.bf16.msra.mxu0 0
    %1153 = vmatprep.subr.bf16.mxu0 0
    %1154 = vmatpush2.bf16.msra.mxu0 0
    %1155 = vmatprep.mubr.bf16.mxu0 0
    %1156 = vmatmul.mubr.bf16.gmra.mxu0 %v1121
    %v1157 = vpop.f32.mrf.mxu0
    %v1158 = vadd.f32 %v1111, %v1157
    %v1159 = vpop.f32.mrf.mxu0
    %v1160 = vpop.f32.mrf.mxu0
    %v1161 = vadd.f32 %v1111, %v1160
    %v1162 = vpop.f32.mrf.mxu0
    %1163 = vdwg.mxu0
    %v1164 = vmax.f32 %v1158, 0.0
    %v1165 = vmax.f32 %v1161, 0.0
    %v1166 = vpack.c.bf16 %v1165, %v1164
    %v1167 = vlaneseq
    %v1168 = vshrl.u32 %v1167, 7
    %v1169 = vsub.s32 6, %v1168
    %v1170 = vrot.slane %v65, %v1169
    %v1175 = vunpack.c.l.b16 %v70
    %v1176 = vunpack.c.l.b16 %v74
    %v1177 = vunpack.c.l.b16 %v78
    %v1178 = vunpack.c.l.b16 %v82
    %v1179 = vpack.c.b16 %v1176, %v1175
    %v1180 = vpack.c.b16 %v1178, %v1177
    %1183 = vmatprep.subr.bf16.mxu0 0
    %1184 = vmatpush1.bf16.xpose.msra.mxu0 0
    %1185 = vmatprep.subr.bf16.mxu0 0
    %1186 = vmatpush1.bf16.xpose.msra.mxu0 0
    %1187 = vmatprep.subr.bf16.mxu0 0
    %1188 = vmatpush1.bf16.xpose.msra.mxu0 0
    %1189 = vmatprep.subr.bf16.mxu0 0
    %1190 = vmatpush1.bf16.xpose.msra.mxu0 0
    %1191 = vmatprep.subr.bf16.mxu0 0
    %1192 = vmatpush1.bf16.xpose.msra.mxu0 0
    %1193 = vmatprep.subr.bf16.mxu0 0
    %1194 = vmatpush1.bf16.xpose.msra.mxu0 0
    %1195 = vmatprep.subr.bf16.mxu0 0
    %1196 = vmatpush1.bf16.xpose.msra.mxu0 %v1180
    %1197 = vmatprep.subr.bf16.mxu0 0
    %1198 = vmatpush1.bf16.xpose.msra.mxu0 %v1179
    %1199 = vmatprep.subr.bf16.mxu0 0
    %1200 = vmatpush2.bf16.xpose.msra.mxu0 0
    %1201 = vmatprep.subr.bf16.mxu0 0
    %1202 = vmatpush2.bf16.xpose.msra.mxu0 0
    %1203 = vmatprep.subr.bf16.mxu0 0
    %1204 = vmatpush2.bf16.xpose.msra.mxu0 0
    %1205 = vmatprep.subr.bf16.mxu0 0
    %1206 = vmatpush2.bf16.xpose.msra.mxu0 0
    %1207 = vmatprep.subr.bf16.mxu0 0
    %1208 = vmatpush2.bf16.xpose.msra.mxu0 0
    %1209 = vmatprep.subr.bf16.mxu0 0
    %1210 = vmatpush2.bf16.xpose.msra.mxu0 0
    %1211 = vmatprep.subr.bf16.mxu0 0
    %1212 = vmatpush2.bf16.xpose.msra.mxu0 0
    %1213 = vmatprep.subr.bf16.mxu0 0
    %1214 = vmatpush2.bf16.xpose.msra.mxu0 0
    %1215 = vmatprep.mubr.bf16.mxu0 0
    %1216 = vmatmul.mubr.bf16.gmra.mxu0 %v1166
    %v1217 = vpop.f32.mrf.mxu0
    %v1218 = vadd.f32 %v1170, %v1217
    %v1219 = vpop.f32.mrf.mxu0
    %v1220 = vpop.f32.mrf.mxu0
    %v1221 = vadd.f32 %v1170, %v1220
    %v1222 = vpop.f32.mrf.mxu0
    %1223 = vdwg.mxu0
    %v1224 = vadd.f32 %v1105, %v1218
    %v1225 = vadd.f32 %v1106, %v1221
    %v1226 = vsel %vm124, %v1224, 0.0
    %1227 = vadd.xlane.f32.xlu0 %v1226
    %v1228 = vpop.xlane.xlu0 %1227
    %v1229 = vsel %vm124, %v1225, 0.0
    %1230 = vadd.xlane.f32.xlu0 %v1229
    %v1231 = vpop.xlane.xlu0 %1230
    %v1232 = vmul.f32 %v1228, %v533
    %v1233 = vmul.f32 %v1231, %v533
    %v1234 = vsub.f32 %v1224, %v1232
    %v1235 = vsub.f32 %v1225, %v1233
    %v1236 = vmul.f32 %v1234, %v1234
    %v1237 = vmul.f32 %v1235, %v1235
    %v1238 = vsel %vm124, %v1236, 0.0
    %1239 = vadd.xlane.f32.xlu0 %v1238
    %v1240 = vpop.xlane.xlu0 %1239
    %v1241 = vsel %vm124, %v1237, 0.0
    %1242 = vadd.xlane.f32.xlu0 %v1241
    %v1243 = vpop.xlane.xlu0 %1242
    %v1244 = vmul.f32 %v1240, %v533
    %v1245 = vmul.f32 %v1243, %v533
    %v1246 = vadd.f32 %v1244, 1e-05
    %v1247 = vadd.f32 %v1245, 1e-05
    %v1248 = vrsqrt.pop %v1246
    %v1249 = vrsqrt.pop %v1247
    %v1250 = vmul.f32 %v1234, %v1248
    %v1251 = vmul.f32 %v1235, %v1249
    %v1252 = vlaneseq
    %v1253 = vshrl.u32 %v1252, 7
    %v1254 = vsub.s32 3, %v1253
    %v1255 = vrot.slane %v66, %v1254
    %v1256 = vmul.f32 %v1250, %v1255
    %v1257 = vmul.f32 %v1251, %v1255
    %v1258 = vlaneseq
    %v1259 = vshrl.u32 %v1258, 7
    %v1260 = vsub.s32 4, %v1259
    %v1261 = vrot.slane %v66, %v1260
    %v1262 = vadd.f32 %v1256, %v1261
    %v1263 = vadd.f32 %v1257, %v1261
    %1264 = vst.msk [vmem:[#allocation8] sm:$0xff] %vm124, %v1262
    %1265 = vst.msk [vmem:[#allocation8 + $0x8] sm:$0xff] %vm124, %v1263
    // Predicated region
    $region34: #{decoder_layer.1} parent=1 // pred_check
      _
    $region35: #{decoder_layer.1} parent=1 // pred_check_branch
      %1267 = sbr.rel (0) target = $region37
    $region36: #{decoder_layer.1} parent=1 // pred_region
      %s1269 = ssub.s32 256, 256
      %1270 = vsyncadd [#allocation4], %s1269
      %s1271 = sshll.u32 [#allocation8], 4
      %s1272 = int_to_ptr.vmem [resolvable:$true] %s1271
      %1277 = dma.vmem_to_hbm [thread:$0]  %s1272, 256, %s5, [#allocation4], 128, 128, 8
    $region37: #{decoder_layer.1} parent=1 // pred_fallthru
      _
    // Predicated region
    $region38: #{decoder_layer.1} parent=1 // pred_check
      _
    $region39: #{decoder_layer.1} parent=1 // pred_check_branch
      %1279 = sbr.rel (0) target = $region41
    $region40: #{decoder_layer.1} parent=1 // pred_region
      %1280 = dma.done [#allocation4], 256
    $region41: #{decoder_layer.1} parent=1 // pred_fallthru
      _
    %1281 = vsyncpa [#allocation3], 1
    %1282 = vsyncpa [#allocation6], 1
    %1283 = vsyncpa [#allocation4], 1

</llo_original>
